<compile_context>
chip_gen: v7x
topology: tpu7x:2x2x1
jax: 0.10.0
libtpu: 0.0.40
codegen_flags: <defaults>
</compile_context>

<pallas_src>
import jax
import jax.numpy as jnp
from jax.experimental import pallas as pl
from jax.experimental.pallas import tpu as pltpu


def _mlp_kernel(x_ref, w1_ref, b1_ref, w2_ref, b2_ref,
                w3_ref, b3_ref, w4_ref, b4_ref, o_ref):
    """One batch tile in (features/hidden, batch) layout; all math in f32."""
    x = x_ref[...]                                   # (4, tile)   batch on lanes
    w1 = w1_ref[...]                                 # (H, 4)

    # Layer 1 off the MXU: K=4, so a full MXU pass would cost as much as a
    # K=128 layer for <2% of the FLOPs.  Four VPU broadcast-FMAs instead.
    z = b1_ref[...]                                  # (H, 1) -> broadcast over lanes
    for f in range(4):                               # static Python loop, unrolled
        z = z + w1[:, f:f + 1] * x[f:f + 1, :]       # (H,1)*(1,tile) -> (H,tile)
    h = jnp.tanh(z)                                  # (H, tile)

    # Hidden layers on the MXU; batch tile fills the MXU N dimension.
    h = jnp.tanh(jnp.dot(w2_ref[...], h,
                         preferred_element_type=jnp.float32) + b2_ref[...])
    h = jnp.tanh(jnp.dot(w3_ref[...], h,
                         preferred_element_type=jnp.float32) + b3_ref[...])

    # Layer 4 collapses to a cheap (1,H)@(H,tile) in this orientation.
    y = jnp.dot(w4_ref[...], h,
                preferred_element_type=jnp.float32) + b4_ref[...]
    o_ref[...] = y.astype(o_ref.dtype)               # (1, tile)  lane-dense store


def _round_up(x, m):
    return ((x + m - 1) // m) * m


def market_pinn_forward(S, t, K, sigma, params, *, tile_n=2048):
    """S, t, K, sigma: (N, 1) float32.  params in PyTorch (out,in) layout.

    Returns (N, 1) float32.
    """
    w1, b1, w2, b2, w3, b3, w4, b4 = params

    # (features, batch) layout: stack the four scalar features directly as
    # rows (replaces the row-major cat + later transpose-in-spirit).
    x = jnp.stack([S.reshape(-1), t.reshape(-1),
                   K.reshape(-1), sigma.reshape(-1)], axis=0).astype(jnp.float32)
    F, N = x.shape                                   # (4, N)
    H = w1.shape[0]

    # Column biases broadcast across the batch/lane axis inside the kernel.
    b1c = b1.reshape(H, 1).astype(jnp.float32)
    b2c = b2.reshape(H, 1).astype(jnp.float32)
    b3c = b3.reshape(H, 1).astype(jnp.float32)
    b4c = b4.reshape(1, 1).astype(jnp.float32)

    # ---- batch-tile choice (primary tuning knob) ----------------------------
    # Big tiles amortize the ~0.35 us per-grid-step overhead; 2048 is the floor
    # for large N per the perf review (4096 also fits VMEM in this layout).
    # Cap so the grid keeps >= MIN_STEPS steps whenever N allows: the leading
    # "parallel" axis shards rows across v7x's two TensorCores, and >= 2 steps
    # per core keeps the input-tile DMA pipelined.  On single-TC v5e/v6e the
    # cap only adds a couple of cheap extra steps for mid-sized N.
    MIN_STEPS = 4
    tile = _round_up(max(128, int(tile_n)), 128)          # lane granularity
    cap = _round_up(pl.cdiv(N, MIN_STEPS), 128)
    tile = min(tile, max(128, cap))

    n_pad = _round_up(N, tile)
    if n_pad != N:
        x = jnp.pad(x, ((0, 0), (0, n_pad - N)))          # dead rows, sliced off
    grid = (n_pad // tile,)

    # Weights/biases (~132 KiB) are presented whole to every grid step; their
    # block index never changes so Pallas skips the re-copy after step 0.
    full = lambda shape: pl.BlockSpec(shape, lambda i: (0, 0))

    out = pl.pallas_call(
        _mlp_kernel,
        out_shape=jax.ShapeDtypeStruct((1, n_pad), jnp.float32),
        grid_spec=pltpu.PrefetchScalarGridSpec(
            num_scalar_prefetch=0,
            grid=grid,
            in_specs=[
                pl.BlockSpec((F, tile), lambda i: (0, i)),  # x batch tile
                full((H, F)), full((H, 1)),                 # layer 1 (out,in), bias col
                full((H, H)), full((H, 1)),                 # layer 2
                full((H, H)), full((H, 1)),                 # layer 3
                full((1, H)), full((1, 1)),                 # layer 4
            ],
            out_specs=pl.BlockSpec((1, tile), lambda i: (0, i)),
        ),
        compiler_params=pltpu.CompilerParams(
            # Batch tiles are independent -> shard across TensorCores (v7x).
            dimension_semantics=("parallel",),
            # VMEM at tile=2048 is ~4 MiB (incl. double buffers and (H,tile)
            # intermediates) -- well under every generation's scoped default,
            # so no explicit vmem_limit_bytes is needed in this layout.
        ),
    )(x, w1.astype(jnp.float32), b1c, w2.astype(jnp.float32), b2c,
      w3.astype(jnp.float32), b3c, w4.astype(jnp.float32), b4c)

    return out[0, :N].reshape(N, 1)


def init_params(key, hidden_dim):
    """Xavier-uniform weights (PyTorch (out,in) layout), zero biases."""
    def xavier(k, fan_out, fan_in):
        bound = jnp.sqrt(6.0 / (fan_in + fan_out))
        return jax.random.uniform(k, (fan_out, fan_in), jnp.float32,
                                  minval=-bound, maxval=bound)

    k1, k2, k3, k4 = jax.random.split(key, 4)
    H = hidden_dim
    w1 = xavier(k1, H, 4); b1 = jnp.zeros((H,), jnp.float32)
    w2 = xavier(k2, H, H); b2 = jnp.zeros((H,), jnp.float32)
    w3 = xavier(k3, H, H); b3 = jnp.zeros((H,), jnp.float32)
    w4 = xavier(k4, 1, H); b4 = jnp.zeros((1,), jnp.float32)
    return (w1, b1, w2, b2, w3, b3, w4, b4)


def _reference(S, t, K, sigma, params):
    """Row-major pure-JAX reference (matches the PyTorch module)."""
    w1, b1, w2, b2, w3, b3, w4, b4 = params
    x = jnp.concatenate([S, t, K, sigma], axis=1)
    h = jnp.tanh(x @ w1.T + b1)
    h = jnp.tanh(h @ w2.T + b2)
    h = jnp.tanh(h @ w3.T + b3)
    return h @ w4.T + b4


if __name__ == "__main__":
    hidden_dim = 128
    N = 300          # small demo batch; NOT a tile multiple, so the padding
                     # path and a multi-step grid (tile=128 -> 3 steps) are hit.

    key = jax.random.PRNGKey(0)
    kp, ks, kt, kk, kv = jax.random.split(key, 5)

    params = init_params(kp, hidden_dim)

    # Deterministic synthetic inputs (positive, option-market-like ranges).
    S_     = 90.0 + 20.0 * jax.random.uniform(ks, (N, 1), jnp.float32)   # underlying
    t_     = 0.05 + jax.random.uniform(kt, (N, 1), jnp.float32)          # time to expiry
    K_     = 80.0 + 40.0 * jax.random.uniform(kk, (N, 1), jnp.float32)   # strike
    sigma_ = 0.1 + 0.4 * jax.random.uniform(kv, (N, 1), jnp.float32)     # implied vol

    out = market_pinn_forward(S_, t_, K_, sigma_, params, tile_n=2048)
    out = jax.block_until_ready(out)

    ref = _reference(S_, t_, K_, sigma_, params)
    assert out.shape == (N, 1)
    assert jnp.allclose(out, ref, atol=1e-4, rtol=1e-4), "mismatch vs reference"

    print("KERNEL_OK")
</pallas_src>

<mosaic_0001>
module attributes {stable_mosaic.version = 11 : i64} {
  func.func @_mlp_kernel(%arg0: i32, %arg1: memref<4x128xf32, #tpu.memory_space<vmem>>, %arg2: memref<128x4xf32, #tpu.memory_space<vmem>>, %arg3: memref<128x1xf32, #tpu.memory_space<vmem>>, %arg4: memref<128x128xf32, #tpu.memory_space<vmem>>, %arg5: memref<128x1xf32, #tpu.memory_space<vmem>>, %arg6: memref<128x128xf32, #tpu.memory_space<vmem>>, %arg7: memref<128x1xf32, #tpu.memory_space<vmem>>, %arg8: memref<1x128xf32, #tpu.memory_space<vmem>>, %arg9: memref<1x1xf32, #tpu.memory_space<vmem>>, %arg10: memref<1x128xf32, #tpu.memory_space<vmem>>) attributes {dimension_semantics = [#tpu.dimension_semantics<parallel>], iteration_bounds = array<i64: 3>, scalar_prefetch = 0 : i64, scratch_operands = 0 : i64, tpu.core_type = #tpu.core_type<tc>, window_params = [{transform_indices = @transform_0, window_bounds = array<i64: 4, 128>}, {pipeline_mode = #tpu.pipeline_mode<synchronous>, transform_indices = @transform_1, window_bounds = array<i64: 128, 4>}, {pipeline_mode = #tpu.pipeline_mode<synchronous>, transform_indices = @transform_2, window_bounds = array<i64: 128, 1>}, {pipeline_mode = #tpu.pipeline_mode<synchronous>, transform_indices = @transform_3, window_bounds = array<i64: 128, 128>}, {pipeline_mode = #tpu.pipeline_mode<synchronous>, transform_indices = @transform_4, window_bounds = array<i64: 128, 1>}, {pipeline_mode = #tpu.pipeline_mode<synchronous>, transform_indices = @transform_5, window_bounds = array<i64: 128, 128>}, {pipeline_mode = #tpu.pipeline_mode<synchronous>, transform_indices = @transform_6, window_bounds = array<i64: 128, 1>}, {pipeline_mode = #tpu.pipeline_mode<synchronous>, transform_indices = @transform_7, window_bounds = array<i64: 1, 128>}, {pipeline_mode = #tpu.pipeline_mode<synchronous>, transform_indices = @transform_8, window_bounds = array<i64: 1, 1>}, {transform_indices = @transform_9, window_bounds = array<i64: 1, 128>}]} {
    %c0 = arith.constant 0 : index
    %c0_0 = arith.constant 0 : index
    %0 = vector.load %arg1[%c0, %c0_0] : memref<4x128xf32, #tpu.memory_space<vmem>>, vector<4x128xf32>
    %c0_1 = arith.constant 0 : index
    %c0_2 = arith.constant 0 : index
    %1 = vector.load %arg2[%c0_1, %c0_2] : memref<128x4xf32, #tpu.memory_space<vmem>>, vector<128x4xf32>
    %c0_3 = arith.constant 0 : index
    %c0_4 = arith.constant 0 : index
    %2 = vector.load %arg3[%c0_3, %c0_4] : memref<128x1xf32, #tpu.memory_space<vmem>>, vector<128x1xf32>
    %3 = vector.extract_strided_slice %1 {offsets = [0, 0], sizes = [128, 1], strides = [1, 1]} : vector<128x4xf32> to vector<128x1xf32>
    %4 = vector.extract_strided_slice %0 {offsets = [0, 0], sizes = [1, 128], strides = [1, 1]} : vector<4x128xf32> to vector<1x128xf32>
    %5 = vector.broadcast %3 : vector<128x1xf32> to vector<128x128xf32>
    %6 = vector.broadcast %4 : vector<1x128xf32> to vector<128x128xf32>
    %7 = arith.mulf %5, %6 : vector<128x128xf32>
    %8 = vector.broadcast %2 : vector<128x1xf32> to vector<128x128xf32>
    %9 = arith.addf %8, %7 : vector<128x128xf32>
    %10 = vector.extract_strided_slice %1 {offsets = [0, 1], sizes = [128, 1], strides = [1, 1]} : vector<128x4xf32> to vector<128x1xf32>
    %11 = vector.extract_strided_slice %0 {offsets = [1, 0], sizes = [1, 128], strides = [1, 1]} : vector<4x128xf32> to vector<1x128xf32>
    %12 = vector.broadcast %10 : vector<128x1xf32> to vector<128x128xf32>
    %13 = vector.broadcast %11 : vector<1x128xf32> to vector<128x128xf32>
    %14 = arith.mulf %12, %13 : vector<128x128xf32>
    %15 = arith.addf %9, %14 : vector<128x128xf32>
    %16 = vector.extract_strided_slice %1 {offsets = [0, 2], sizes = [128, 1], strides = [1, 1]} : vector<128x4xf32> to vector<128x1xf32>
    %17 = vector.extract_strided_slice %0 {offsets = [2, 0], sizes = [1, 128], strides = [1, 1]} : vector<4x128xf32> to vector<1x128xf32>
    %18 = vector.broadcast %16 : vector<128x1xf32> to vector<128x128xf32>
    %19 = vector.broadcast %17 : vector<1x128xf32> to vector<128x128xf32>
    %20 = arith.mulf %18, %19 : vector<128x128xf32>
    %21 = arith.addf %15, %20 : vector<128x128xf32>
    %22 = vector.extract_strided_slice %1 {offsets = [0, 3], sizes = [128, 1], strides = [1, 1]} : vector<128x4xf32> to vector<128x1xf32>
    %23 = vector.extract_strided_slice %0 {offsets = [3, 0], sizes = [1, 128], strides = [1, 1]} : vector<4x128xf32> to vector<1x128xf32>
    %24 = vector.broadcast %22 : vector<128x1xf32> to vector<128x128xf32>
    %25 = vector.broadcast %23 : vector<1x128xf32> to vector<128x128xf32>
    %26 = arith.mulf %24, %25 : vector<128x128xf32>
    %27 = arith.addf %21, %26 : vector<128x128xf32>
    %28 = math.tanh %27 : vector<128x128xf32>
    %c0_5 = arith.constant 0 : index
    %c0_6 = arith.constant 0 : index
    %29 = vector.load %arg4[%c0_5, %c0_6] : memref<128x128xf32, #tpu.memory_space<vmem>>, vector<128x128xf32>
    %cst = arith.constant dense<0.000000e+00> : vector<128x128xf32>
    %30 = tpu.matmul %29, %28, %cst {dimension_numbers = #tpu.dot_dimension_numbers<[1], [0], [0], [1], [0, 0, 1, 1], [], []>} : vector<128x128xf32>, vector<128x128xf32>, vector<128x128xf32> -> vector<128x128xf32>
    %c0_7 = arith.constant 0 : index
    %c0_8 = arith.constant 0 : index
    %31 = vector.load %arg5[%c0_7, %c0_8] : memref<128x1xf32, #tpu.memory_space<vmem>>, vector<128x1xf32>
    %32 = vector.broadcast %31 : vector<128x1xf32> to vector<128x128xf32>
    %33 = arith.addf %30, %32 : vector<128x128xf32>
    %34 = math.tanh %33 : vector<128x128xf32>
    %c0_9 = arith.constant 0 : index
    %c0_10 = arith.constant 0 : index
    %35 = vector.load %arg6[%c0_9, %c0_10] : memref<128x128xf32, #tpu.memory_space<vmem>>, vector<128x128xf32>
    %cst_11 = arith.constant dense<0.000000e+00> : vector<128x128xf32>
    %36 = tpu.matmul %35, %34, %cst_11 {dimension_numbers = #tpu.dot_dimension_numbers<[1], [0], [0], [1], [0, 0, 1, 1], [], []>} : vector<128x128xf32>, vector<128x128xf32>, vector<128x128xf32> -> vector<128x128xf32>
    %c0_12 = arith.constant 0 : index
    %c0_13 = arith.constant 0 : index
    %37 = vector.load %arg7[%c0_12, %c0_13] : memref<128x1xf32, #tpu.memory_space<vmem>>, vector<128x1xf32>
    %38 = vector.broadcast %37 : vector<128x1xf32> to vector<128x128xf32>
    %39 = arith.addf %36, %38 : vector<128x128xf32>
    %40 = math.tanh %39 : vector<128x128xf32>
    %c0_14 = arith.constant 0 : index
    %c0_15 = arith.constant 0 : index
    %41 = vector.load %arg8[%c0_14, %c0_15] : memref<1x128xf32, #tpu.memory_space<vmem>>, vector<1x128xf32>
    %cst_16 = arith.constant dense<0.000000e+00> : vector<1x128xf32>
    %42 = tpu.matmul %41, %40, %cst_16 {dimension_numbers = #tpu.dot_dimension_numbers<[1], [0], [0], [1], [0, 0, 1, 1], [], []>} : vector<1x128xf32>, vector<128x128xf32>, vector<1x128xf32> -> vector<1x128xf32>
    %c0_17 = arith.constant 0 : index
    %c0_18 = arith.constant 0 : index
    %43 = vector.load %arg9[%c0_17, %c0_18] : memref<1x1xf32, #tpu.memory_space<vmem>>, vector<1x1xf32>
    %44 = vector.broadcast %43 : vector<1x1xf32> to vector<1x128xf32>
    %45 = arith.addf %42, %44 : vector<1x128xf32>
    %c0_19 = arith.constant 0 : index
    %c0_20 = arith.constant 0 : index
    %46 = vector.load %arg10[%c0_19, %c0_20] : memref<1x128xf32, #tpu.memory_space<vmem>>, vector<1x128xf32>
    tpu.vector_store %arg10[%c0_19, %c0_20], %45 {strides = array<i32>} : memref<1x128xf32, #tpu.memory_space<vmem>>, vector<1x128xf32>,
    return
  }
  func.func @transform_0(%arg0: i32) -> (i32, i32) {
    %c0_i32 = arith.constant 0 : i32
    %c0_i32_0 = arith.constant 0 : i32
    return %c0_i32, %arg0 : i32, i32
  }
  func.func @transform_1(%arg0: i32) -> (i32, i32) {
    %c0_i32 = arith.constant 0 : i32
    %c0_i32_0 = arith.constant 0 : i32
    %c0_i32_1 = arith.constant 0 : i32
    return %c0_i32, %c0_i32_0 : i32, i32
  }
  func.func @transform_2(%arg0: i32) -> (i32, i32) {
    %c0_i32 = arith.constant 0 : i32
    %c0_i32_0 = arith.constant 0 : i32
    %c0_i32_1 = arith.constant 0 : i32
    return %c0_i32, %c0_i32_0 : i32, i32
  }
  func.func @transform_3(%arg0: i32) -> (i32, i32) {
    %c0_i32 = arith.constant 0 : i32
    %c0_i32_0 = arith.constant 0 : i32
    %c0_i32_1 = arith.constant 0 : i32
    return %c0_i32, %c0_i32_0 : i32, i32
  }
  func.func @transform_4(%arg0: i32) -> (i32, i32) {
    %c0_i32 = arith.constant 0 : i32
    %c0_i32_0 = arith.constant 0 : i32
    %c0_i32_1 = arith.constant 0 : i32
    return %c0_i32, %c0_i32_0 : i32, i32
  }
  func.func @transform_5(%arg0: i32) -> (i32, i32) {
    %c0_i32 = arith.constant 0 : i32
    %c0_i32_0 = arith.constant 0 : i32
    %c0_i32_1 = arith.constant 0 : i32
    return %c0_i32, %c0_i32_0 : i32, i32
  }
  func.func @transform_6(%arg0: i32) -> (i32, i32) {
    %c0_i32 = arith.constant 0 : i32
    %c0_i32_0 = arith.constant 0 : i32
    %c0_i32_1 = arith.constant 0 : i32
    return %c0_i32, %c0_i32_0 : i32, i32
  }
  func.func @transform_7(%arg0: i32) -> (i32, i32) {
    %c0_i32 = arith.constant 0 : i32
    %c0_i32_0 = arith.constant 0 : i32
    %c0_i32_1 = arith.constant 0 : i32
    return %c0_i32, %c0_i32_0 : i32, i32
  }
  func.func @transform_8(%arg0: i32) -> (i32, i32) {
    %c0_i32 = arith.constant 0 : i32
    %c0_i32_0 = arith.constant 0 : i32
    %c0_i32_1 = arith.constant 0 : i32
    return %c0_i32, %c0_i32_0 : i32, i32
  }
  func.func @transform_9(%arg0: i32) -> (i32, i32) {
    %c0_i32 = arith.constant 0 : i32
    %c0_i32_0 = arith.constant 0 : i32
    return %c0_i32, %arg0 : i32, i32
  }
}

</mosaic_0001>

<llo_original>
// kernel: tpu_custom_call.1
$region0: #{tpu_custom_call.1}
  #allocation0 [shape = 'u32[]', space=smem, size = 0x4, offset = 0x4, fixed_abs, tag = 'smem constant byte address 0x4 - core index']
  #allocation1 [shape = 'u32[144,128]{1,0:T(1,128)}', space=vmem, size = 0x12000, scoped, tag = 'internal scratch']
  #allocation2 [shape = 'f32[1,1]{1,0:T(1,128)S(1)}', space=vmem, size = 0x200, scoped, tag = 'scoped memory for tpu_custom_call.1']
  %s0 = inlined_call_operand.vmem [shape: f32[4,384], index: 0, kind: input, shape index: {}]
  %s1 = inlined_call_operand.vmem [shape: f32[128,4], index: 1, kind: input, shape index: {}]
  %s2 = inlined_call_operand.vmem [shape: f32[128,1], index: 2, kind: input, shape index: {}]
  %s3 = inlined_call_operand.vmem [shape: f32[128,128], index: 3, kind: input, shape index: {}]
  %s4 = inlined_call_operand.vmem [shape: f32[128,1], index: 4, kind: input, shape index: {}]
  %s5 = inlined_call_operand.vmem [shape: f32[128,128], index: 5, kind: input, shape index: {}]
  %s6 = inlined_call_operand.vmem [shape: f32[128,1], index: 6, kind: input, shape index: {}]
  %s7 = inlined_call_operand.vmem [shape: f32[1,128], index: 7, kind: input, shape index: {}]
  %s8 = inlined_call_operand.<no memory space> [shape: f32[1,1], index: 8, kind: input, shape index: {}]
  %s9 = inlined_call_operand.hbm [shape: f32[1,384], index: 9, kind: output, shape index: {}]
  %s10 = sld [smem:[#allocation0]]
  $region69: #{tpu_custom_call.1} parent=0
    _
  %s12 = ssub.s32 1, %s10
  %s13 = scalar_select 0, %s12, %s10
  %v14 = vstv %s8
  %15 = vst [vmem:[#allocation2] sm:$0x1] %v14
  $region1: #{tpu_custom_call.1} parent=0
    #allocation3 [shape = 'u8[1024]{0}', space=vmem, size = 0x400, scoped, tag = 'output window, operand 0']
    #allocation4 [shape = 's32[2]{0}', space=sflag, size = 0x8, scoped, tag = 'scoped memory for tpu_custom_call.1']
    %16 = vsyncpa [#allocation4], 0
    %s17 = scalar_lea.sflag [#allocation4], 1
    %18 = vsyncpa %s17, 0
    loop: start=0, step=1, limit=5
    $region2: #{tpu_custom_call.1} parent=1 // loop_pre_header
      _
    $region3: #{tpu_custom_call.1} parent=1 // loop_header
      %s20 = sphi 0, %s24
      %p21 = scmp.ge.s32.totalorder %s20, 5
      %s30 = sphi 0, %s32
      %s33 = sphi 0, %s30
      %s34 = sphi 0, %s33
      %s50 = sphi 0, %s34
      %s54 = sphi 0, %s54
      %s56 = sphi 0, %s54
      %s57 = sphi 0, %s56
      %s71 = sphi 0, %s57
      %s75 = sphi 0, %s75
      %s77 = sphi 0, %s75
      %s78 = sphi 0, %s77
      %s92 = sphi 0, %s78
      %s96 = sphi 0, %s96
      %s98 = sphi 0, %s96
      %s99 = sphi 0, %s98
      %s113 = sphi 0, %s99
      %s117 = sphi 0, %s117
      %s119 = sphi 0, %s117
      %s120 = sphi 0, %s119
      %s134 = sphi 0, %s120
      %s138 = sphi 0, %s138
      %s140 = sphi 0, %s138
      %s141 = sphi 0, %s140
      %s155 = sphi 0, %s141
      %s159 = sphi 0, %s159
      %s161 = sphi 0, %s159
      %s162 = sphi 0, %s161
      %s176 = sphi 0, %s162
      %s180 = sphi 0, %s180
      %s182 = sphi 0, %s180
      %s183 = sphi 0, %s182
      %s197 = sphi 0, %s183
      %s201 = sphi 0, %s201
      %s203 = sphi 0, %s201
      %s204 = sphi 0, %s203
      %s218 = sphi 0, %s204
      %s224 = sphi 0, %s226
      %s227 = sphi 0, %s224
      %s228 = sphi 0, %s227
      %s244 = sphi 0, %s228
    $region4: #{tpu_custom_call.1} parent=1 // loop_header_branch
      %23 = sbr.rel (%p21) target = $region8
    $region5: #{tpu_custom_call.1} parent=1 // loop_body
      %s25 = ssub.s32 %s20, 1
      %s26 = ssub.s32 %s20, 2
      %s27 = sadd.s32 %s20, 1
      %s28 = ssub.s32 %s20, %s27
      %p29 = scmp.eq.s32.totalorder %s28, 0
      %s31 = sadd.s32 %s30, 1
      %s32 = scalar_select %p29, %s30, %s31
      %p35 = pneg %p29
      %p36 = scmp.eq.s32.totalorder %s20, 2
      %p37 = por %p35, %p36
      %p38 = scmp.ne.s32.totalorder %s30, %s33
      %p39 = scmp.eq.s32.totalorder %s20, 0
      %p40 = por %p38, %p39
      %p41 = scmp.ne.s32.totalorder %s30, %s33
      %p42 = scmp.eq.s32.totalorder %s25, 2
      %p43 = por %p41, %p42
      %p44 = scmp.ne.s32.totalorder %s33, %s34
      %p45 = scmp.eq.s32.totalorder %s25, 0
      %p46 = por %p44, %p45
      %p47 = scmp.ne.s32.totalorder %s33, %s34
      %p48 = scmp.eq.s32.totalorder %s26, 2
      %p49 = por %p47, %p48
      %p51 = scmp.ne.s32.totalorder %s34, %s50
      %p52 = scmp.eq.s32.totalorder %s26, 0
      %p53 = por %p51, %p52
      %s55 = sadd.s32 %s54, 1
      %p58 = scmp.eq.s32.totalorder %s20, 2
      %p59 = scmp.ne.s32.totalorder %s54, %s56
      %p60 = scmp.eq.s32.totalorder %s20, 0
      %p61 = por %p59, %p60
      %p62 = scmp.ne.s32.totalorder %s54, %s56
      %p63 = scmp.eq.s32.totalorder %s25, 2
      %p64 = por %p62, %p63
      %p65 = scmp.ne.s32.totalorder %s56, %s57
      %p66 = scmp.eq.s32.totalorder %s25, 0
      %p67 = por %p65, %p66
      %p68 = scmp.ne.s32.totalorder %s56, %s57
      %p69 = scmp.eq.s32.totalorder %s26, 2
      %p70 = por %p68, %p69
      %p72 = scmp.ne.s32.totalorder %s57, %s71
      %p73 = scmp.eq.s32.totalorder %s26, 0
      %p74 = por %p72, %p73
      %s76 = sadd.s32 %s75, 1
      %p79 = scmp.eq.s32.totalorder %s20, 2
      %p80 = scmp.ne.s32.totalorder %s75, %s77
      %p81 = scmp.eq.s32.totalorder %s20, 0
      %p82 = por %p80, %p81
      %p83 = scmp.ne.s32.totalorder %s75, %s77
      %p84 = scmp.eq.s32.totalorder %s25, 2
      %p85 = por %p83, %p84
      %p86 = scmp.ne.s32.totalorder %s77, %s78
      %p87 = scmp.eq.s32.totalorder %s25, 0
      %p88 = por %p86, %p87
      %p89 = scmp.ne.s32.totalorder %s77, %s78
      %p90 = scmp.eq.s32.totalorder %s26, 2
      %p91 = por %p89, %p90
      %p93 = scmp.ne.s32.totalorder %s78, %s92
      %p94 = scmp.eq.s32.totalorder %s26, 0
      %p95 = por %p93, %p94
      %s97 = sadd.s32 %s96, 1
      %p100 = scmp.eq.s32.totalorder %s20, 2
      %p101 = scmp.ne.s32.totalorder %s96, %s98
      %p102 = scmp.eq.s32.totalorder %s20, 0
      %p103 = por %p101, %p102
      %p104 = scmp.ne.s32.totalorder %s96, %s98
      %p105 = scmp.eq.s32.totalorder %s25, 2
      %p106 = por %p104, %p105
      %p107 = scmp.ne.s32.totalorder %s98, %s99
      %p108 = scmp.eq.s32.totalorder %s25, 0
      %p109 = por %p107, %p108
      %p110 = scmp.ne.s32.totalorder %s98, %s99
      %p111 = scmp.eq.s32.totalorder %s26, 2
      %p112 = por %p110, %p111
      %p114 = scmp.ne.s32.totalorder %s99, %s113
      %p115 = scmp.eq.s32.totalorder %s26, 0
      %p116 = por %p114, %p115
      %s118 = sadd.s32 %s117, 1
      %p121 = scmp.eq.s32.totalorder %s20, 2
      %p122 = scmp.ne.s32.totalorder %s117, %s119
      %p123 = scmp.eq.s32.totalorder %s20, 0
      %p124 = por %p122, %p123
      %p125 = scmp.ne.s32.totalorder %s117, %s119
      %p126 = scmp.eq.s32.totalorder %s25, 2
      %p127 = por %p125, %p126
      %p128 = scmp.ne.s32.totalorder %s119, %s120
      %p129 = scmp.eq.s32.totalorder %s25, 0
      %p130 = por %p128, %p129
      %p131 = scmp.ne.s32.totalorder %s119, %s120
      %p132 = scmp.eq.s32.totalorder %s26, 2
      %p133 = por %p131, %p132
      %p135 = scmp.ne.s32.totalorder %s120, %s134
      %p136 = scmp.eq.s32.totalorder %s26, 0
      %p137 = por %p135, %p136
      %s139 = sadd.s32 %s138, 1
      %p142 = scmp.eq.s32.totalorder %s20, 2
      %p143 = scmp.ne.s32.totalorder %s138, %s140
      %p144 = scmp.eq.s32.totalorder %s20, 0
      %p145 = por %p143, %p144
      %p146 = scmp.ne.s32.totalorder %s138, %s140
      %p147 = scmp.eq.s32.totalorder %s25, 2
      %p148 = por %p146, %p147
      %p149 = scmp.ne.s32.totalorder %s140, %s141
      %p150 = scmp.eq.s32.totalorder %s25, 0
      %p151 = por %p149, %p150
      %p152 = scmp.ne.s32.totalorder %s140, %s141
      %p153 = scmp.eq.s32.totalorder %s26, 2
      %p154 = por %p152, %p153
      %p156 = scmp.ne.s32.totalorder %s141, %s155
      %p157 = scmp.eq.s32.totalorder %s26, 0
      %p158 = por %p156, %p157
      %s160 = sadd.s32 %s159, 1
      %p163 = scmp.eq.s32.totalorder %s20, 2
      %p164 = scmp.ne.s32.totalorder %s159, %s161
      %p165 = scmp.eq.s32.totalorder %s20, 0
      %p166 = por %p164, %p165
      %p167 = scmp.ne.s32.totalorder %s159, %s161
      %p168 = scmp.eq.s32.totalorder %s25, 2
      %p169 = por %p167, %p168
      %p170 = scmp.ne.s32.totalorder %s161, %s162
      %p171 = scmp.eq.s32.totalorder %s25, 0
      %p172 = por %p170, %p171
      %p173 = scmp.ne.s32.totalorder %s161, %s162
      %p174 = scmp.eq.s32.totalorder %s26, 2
      %p175 = por %p173, %p174
      %p177 = scmp.ne.s32.totalorder %s162, %s176
      %p178 = scmp.eq.s32.totalorder %s26, 0
      %p179 = por %p177, %p178
      %s181 = sadd.s32 %s180, 1
      %p184 = scmp.eq.s32.totalorder %s20, 2
      %p185 = scmp.ne.s32.totalorder %s180, %s182
      %p186 = scmp.eq.s32.totalorder %s20, 0
      %p187 = por %p185, %p186
      %p188 = scmp.ne.s32.totalorder %s180, %s182
      %p189 = scmp.eq.s32.totalorder %s25, 2
      %p190 = por %p188, %p189
      %p191 = scmp.ne.s32.totalorder %s182, %s183
      %p192 = scmp.eq.s32.totalorder %s25, 0
      %p193 = por %p191, %p192
      %p194 = scmp.ne.s32.totalorder %s182, %s183
      %p195 = scmp.eq.s32.totalorder %s26, 2
      %p196 = por %p194, %p195
      %p198 = scmp.ne.s32.totalorder %s183, %s197
      %p199 = scmp.eq.s32.totalorder %s26, 0
      %p200 = por %p198, %p199
      %s202 = sadd.s32 %s201, 1
      %p205 = scmp.eq.s32.totalorder %s20, 2
      %p206 = scmp.ne.s32.totalorder %s201, %s203
      %p207 = scmp.eq.s32.totalorder %s20, 0
      %p208 = por %p206, %p207
      %p209 = scmp.ne.s32.totalorder %s201, %s203
      %p210 = scmp.eq.s32.totalorder %s25, 2
      %p211 = por %p209, %p210
      %p212 = scmp.ne.s32.totalorder %s203, %s204
      %p213 = scmp.eq.s32.totalorder %s25, 0
      %p214 = por %p212, %p213
      %p215 = scmp.ne.s32.totalorder %s203, %s204
      %p216 = scmp.eq.s32.totalorder %s26, 2
      %p217 = por %p215, %p216
      %p219 = scmp.ne.s32.totalorder %s204, %s218
      %p220 = scmp.eq.s32.totalorder %s26, 0
      %p221 = por %p219, %p220
      %s222 = ssub.s32 %s20, %s27
      %p223 = scmp.eq.s32.totalorder %s222, 0
      %s225 = sadd.s32 %s224, 1
      %s226 = scalar_select %p223, %s224, %s225
      %p229 = pneg %p223
      %p230 = scmp.eq.s32.totalorder %s20, 2
      %p231 = por %p229, %p230
      %p232 = scmp.ne.s32.totalorder %s224, %s227
      %p233 = scmp.eq.s32.totalorder %s20, 0
      %p234 = por %p232, %p233
      %p235 = scmp.ne.s32.totalorder %s224, %s227
      %p236 = scmp.eq.s32.totalorder %s25, 2
      %p237 = por %p235, %p236
      %p238 = scmp.ne.s32.totalorder %s227, %s228
      %p239 = scmp.eq.s32.totalorder %s25, 0
      %p240 = por %p238, %p239
      %p241 = scmp.ne.s32.totalorder %s227, %s228
      %p242 = scmp.eq.s32.totalorder %s26, 2
      %p243 = por %p241, %p242
      %p245 = scmp.ne.s32.totalorder %s228, %s244
      %p246 = scmp.eq.s32.totalorder %s26, 0
      %p247 = por %p245, %p246
      %p248 = scmp.le.s32.totalorder 1, %s20
      %p249 = scmp.lt.s32.totalorder %s20, 4
      %p250 = pnand %p248, %p249
      %p251 = pneg %p250
      // Predicated region
      $region9: #{tpu_custom_call.1} parent=5 // pred_check
        _
      $region10: #{tpu_custom_call.1} parent=5 // pred_check_branch
        %253 = sbr.rel (%p250) target = $region12
      $region11: #{tpu_custom_call.1} parent=5 // pred_region
        %s254 = ssub.s32 %s20, 1
        // Predicated region
        $region13: #{tpu_custom_call.1} parent=11 // pred_check
          %p255 = pneg %p67
        $region14: #{tpu_custom_call.1} parent=11 // pred_check_branch
          %257 = sbr.rel (%p255) target = $region16
        $region15: #{tpu_custom_call.1} parent=11 // pred_region
          _
        $region16: #{tpu_custom_call.1} parent=11 // pred_fallthru
          _
        // Predicated region
        $region17: #{tpu_custom_call.1} parent=11 // pred_check
          %p258 = pneg %p88
        $region18: #{tpu_custom_call.1} parent=11 // pred_check_branch
          %260 = sbr.rel (%p258) target = $region20
        $region19: #{tpu_custom_call.1} parent=11 // pred_region
          _
        $region20: #{tpu_custom_call.1} parent=11 // pred_fallthru
          _
        // Predicated region
        $region21: #{tpu_custom_call.1} parent=11 // pred_check
          %p261 = pneg %p109
        $region22: #{tpu_custom_call.1} parent=11 // pred_check_branch
          %263 = sbr.rel (%p261) target = $region24
        $region23: #{tpu_custom_call.1} parent=11 // pred_region
          _
        $region24: #{tpu_custom_call.1} parent=11 // pred_fallthru
          _
        // Predicated region
        $region25: #{tpu_custom_call.1} parent=11 // pred_check
          %p264 = pneg %p130
        $region26: #{tpu_custom_call.1} parent=11 // pred_check_branch
          %266 = sbr.rel (%p264) target = $region28
        $region27: #{tpu_custom_call.1} parent=11 // pred_region
          _
        $region28: #{tpu_custom_call.1} parent=11 // pred_fallthru
          _
        // Predicated region
        $region29: #{tpu_custom_call.1} parent=11 // pred_check
          %p267 = pneg %p151
        $region30: #{tpu_custom_call.1} parent=11 // pred_check_branch
          %269 = sbr.rel (%p267) target = $region32
        $region31: #{tpu_custom_call.1} parent=11 // pred_region
          _
        $region32: #{tpu_custom_call.1} parent=11 // pred_fallthru
          _
        // Predicated region
        $region33: #{tpu_custom_call.1} parent=11 // pred_check
          %p270 = pneg %p172
        $region34: #{tpu_custom_call.1} parent=11 // pred_check_branch
          %272 = sbr.rel (%p270) target = $region36
        $region35: #{tpu_custom_call.1} parent=11 // pred_region
          _
        $region36: #{tpu_custom_call.1} parent=11 // pred_fallthru
          _
        // Predicated region
        $region37: #{tpu_custom_call.1} parent=11 // pred_check
          %p273 = pneg %p193
        $region38: #{tpu_custom_call.1} parent=11 // pred_check_branch
          %275 = sbr.rel (%p273) target = $region40
        $region39: #{tpu_custom_call.1} parent=11 // pred_region
          _
        $region40: #{tpu_custom_call.1} parent=11 // pred_fallthru
          _
        // Predicated region
        $region41: #{tpu_custom_call.1} parent=11 // pred_check
          %p276 = pneg %p214
        $region42: #{tpu_custom_call.1} parent=11 // pred_check_branch
          %278 = sbr.rel (%p276) target = $region44
        $region43: #{tpu_custom_call.1} parent=11 // pred_region
          _
        $region44: #{tpu_custom_call.1} parent=11 // pred_fallthru
          _
      $region12: #{tpu_custom_call.1} parent=5 // pred_fallthru
        _
      %p279 = scmp.lt.s32.totalorder %s20, 3
      // Predicated region
      $region45: #{tpu_custom_call.1} parent=5 // pred_check
        %p280 = pneg %p279
      $region46: #{tpu_custom_call.1} parent=5 // pred_check_branch
        %282 = sbr.rel (%p280) target = $region48
      $region47: #{tpu_custom_call.1} parent=5 // pred_region
        // Predicated region
        $region49: #{tpu_custom_call.1} parent=47 // pred_check
          %p283 = pneg %p40
        $region50: #{tpu_custom_call.1} parent=47 // pred_check_branch
          %285 = sbr.rel (%p283) target = $region52
        $region51: #{tpu_custom_call.1} parent=47 // pred_region
          %p286 = scmp.lt.s32.totalorder %s20, 2
          %s287 = scalar_select %p286, %s20, 2
          %s288 = smul.addr %s287, 4
          %s289 = scalar_lea.vmem %s0, %s288
        $region52: #{tpu_custom_call.1} parent=47 // pred_fallthru
          _
      $region48: #{tpu_custom_call.1} parent=5 // pred_fallthru
        _
      %p290 = scmp.le.s32.totalorder 1, %s20
      %p291 = scmp.lt.s32.totalorder %s20, 4
      %p292 = pnand %p290, %p291
      %p293 = pneg %p292
      // Predicated region
      $region53: #{tpu_custom_call.1} parent=5 // pred_check
        _
      $region54: #{tpu_custom_call.1} parent=5 // pred_check_branch
        %295 = sbr.rel (%p292) target = $region56
      $region55: #{tpu_custom_call.1} parent=5 // pred_region
        %s296 = ssub.s32 %s20, 1
        %p297 = scmp.lt.s32.totalorder %s25, 2
        %s298 = scalar_select %p297, %s25, 2
        %s299 = smul.addr %s298, 4
        %s300 = scalar_lea.vmem %s0, %s299
        %p301 = pneg %p46
        %p302 = pneg %p43
        %p303 = pneg %p67
        %p304 = pneg %p64
        %p305 = pneg %p88
        %p306 = pneg %p85
        %p307 = pneg %p109
        %p308 = pneg %p106
        %p309 = pneg %p130
        %p310 = pneg %p127
        %p311 = pneg %p151
        %p312 = pneg %p148
        %p313 = pneg %p172
        %p314 = pneg %p169
        %p315 = pneg %p193
        %p316 = pneg %p190
        %p317 = pneg %p214
        %p318 = pneg %p211
        %p319 = pneg %p240
        %p320 = pneg %p237
        %s321 = sand.u32 %s227, 1
        %s322 = scalar_lea.sflag [#allocation4], %s321
        %s323 = sand.u32 %s227, 1
        %s324 = scalar_lea.vmem [#allocation3], %s323
        %p325 = scmp.lt.s32.totalorder %s25, 2
        %s326 = scalar_select %p325, %s25, 2
        %s327 = smul.addr %s326, 4
        %s328 = scalar_lea.vmem %s0, %s327
        %v329 = vld [vmem:[%s328] sm:$0xf]
        %v330 = vld [vmem:[%s1] sm:$0xff]
        %v331 = vld [vmem:[%s1 + $0x8] sm:$0xff]
        %v332 = vld [vmem:[%s1 + $0x10] sm:$0xff]
        %v333 = vld [vmem:[%s1 + $0x18] sm:$0xff]
        %v334 = vld [vmem:[%s1 + $0x20] sm:$0xff]
        %v335 = vld [vmem:[%s1 + $0x28] sm:$0xff]
        %v336 = vld [vmem:[%s1 + $0x30] sm:$0xff]
        %v337 = vld [vmem:[%s1 + $0x38] sm:$0xff]
        %v338 = vld [vmem:[%s1 + $0x40] sm:$0xff]
        %v339 = vld [vmem:[%s1 + $0x48] sm:$0xff]
        %v340 = vld [vmem:[%s1 + $0x50] sm:$0xff]
        %v341 = vld [vmem:[%s1 + $0x58] sm:$0xff]
        %v342 = vld [vmem:[%s1 + $0x60] sm:$0xff]
        %v343 = vld [vmem:[%s1 + $0x68] sm:$0xff]
        %v344 = vld [vmem:[%s1 + $0x70] sm:$0xff]
        %v345 = vld [vmem:[%s1 + $0x78] sm:$0xff]
        %v346 = vld [vmem:[%s2] sm:$0xff]
        %v347 = vld [vmem:[%s2 + $0x8] sm:$0xff]
        %v348 = vld [vmem:[%s2 + $0x10] sm:$0xff]
        %v349 = vld [vmem:[%s2 + $0x18] sm:$0xff]
        %v350 = vld [vmem:[%s2 + $0x20] sm:$0xff]
        %v351 = vld [vmem:[%s2 + $0x28] sm:$0xff]
        %v352 = vld [vmem:[%s2 + $0x30] sm:$0xff]
        %v353 = vld [vmem:[%s2 + $0x38] sm:$0xff]
        %v354 = vld [vmem:[%s2 + $0x40] sm:$0xff]
        %v355 = vld [vmem:[%s2 + $0x48] sm:$0xff]
        %v356 = vld [vmem:[%s2 + $0x50] sm:$0xff]
        %v357 = vld [vmem:[%s2 + $0x58] sm:$0xff]
        %v358 = vld [vmem:[%s2 + $0x60] sm:$0xff]
        %v359 = vld [vmem:[%s2 + $0x68] sm:$0xff]
        %v360 = vld [vmem:[%s2 + $0x70] sm:$0xff]
        %v361 = vld [vmem:[%s2 + $0x78] sm:$0xff]
        %363 = vset.pattern.permute.xlu0 0
        %364 = vperm.xlu0 %363, %v330
        %v365 = vpop.permute.xlu0 %364
        %368 = vset.pattern.permute.xlu0 0
        %369 = vperm.xlu0 %368, %v331
        %v370 = vpop.permute.xlu0 %369
        %373 = vset.pattern.permute.xlu0 0
        %374 = vperm.xlu0 %373, %v332
        %v375 = vpop.permute.xlu0 %374
        %378 = vset.pattern.permute.xlu0 0
        %379 = vperm.xlu0 %378, %v333
        %v380 = vpop.permute.xlu0 %379
        %383 = vset.pattern.permute.xlu0 0
        %384 = vperm.xlu0 %383, %v334
        %v385 = vpop.permute.xlu0 %384
        %388 = vset.pattern.permute.xlu0 0
        %389 = vperm.xlu0 %388, %v335
        %v390 = vpop.permute.xlu0 %389
        %393 = vset.pattern.permute.xlu0 0
        %394 = vperm.xlu0 %393, %v336
        %v395 = vpop.permute.xlu0 %394
        %398 = vset.pattern.permute.xlu0 0
        %399 = vperm.xlu0 %398, %v337
        %v400 = vpop.permute.xlu0 %399
        %403 = vset.pattern.permute.xlu0 0
        %404 = vperm.xlu0 %403, %v338
        %v405 = vpop.permute.xlu0 %404
        %408 = vset.pattern.permute.xlu0 0
        %409 = vperm.xlu0 %408, %v339
        %v410 = vpop.permute.xlu0 %409
        %413 = vset.pattern.permute.xlu0 0
        %414 = vperm.xlu0 %413, %v340
        %v415 = vpop.permute.xlu0 %414
        %418 = vset.pattern.permute.xlu0 0
        %419 = vperm.xlu0 %418, %v341
        %v420 = vpop.permute.xlu0 %419
        %423 = vset.pattern.permute.xlu0 0
        %424 = vperm.xlu0 %423, %v342
        %v425 = vpop.permute.xlu0 %424
        %428 = vset.pattern.permute.xlu0 0
        %429 = vperm.xlu0 %428, %v343
        %v430 = vpop.permute.xlu0 %429
        %433 = vset.pattern.permute.xlu0 0
        %434 = vperm.xlu0 %433, %v344
        %v435 = vpop.permute.xlu0 %434
        %438 = vset.pattern.permute.xlu0 0
        %439 = vperm.xlu0 %438, %v345
        %v440 = vpop.permute.xlu0 %439
        %v442 = vlaneseq
        %v443 = vshrl.u32 %v442, 7
        %v444 = vsub.s32 0, %v443
        %v445 = vrot.slane %v329, %v444
        %v446 = vmul.f32 %v365, %v445
        %v447 = vmul.f32 %v370, %v445
        %v448 = vmul.f32 %v375, %v445
        %v449 = vmul.f32 %v380, %v445
        %v450 = vmul.f32 %v385, %v445
        %v451 = vmul.f32 %v390, %v445
        %v452 = vmul.f32 %v395, %v445
        %v453 = vmul.f32 %v400, %v445
        %v454 = vmul.f32 %v405, %v445
        %v455 = vmul.f32 %v410, %v445
        %v456 = vmul.f32 %v415, %v445
        %v457 = vmul.f32 %v420, %v445
        %v458 = vmul.f32 %v425, %v445
        %v459 = vmul.f32 %v430, %v445
        %v460 = vmul.f32 %v435, %v445
        %v461 = vmul.f32 %v440, %v445
        %463 = vset.pattern.permute.xlu0 0
        %464 = vperm.xlu0 %463, %v346
        %v465 = vpop.permute.xlu0 %464
        %468 = vset.pattern.permute.xlu0 0
        %469 = vperm.xlu0 %468, %v347
        %v470 = vpop.permute.xlu0 %469
        %473 = vset.pattern.permute.xlu0 0
        %474 = vperm.xlu0 %473, %v348
        %v475 = vpop.permute.xlu0 %474
        %478 = vset.pattern.permute.xlu0 0
        %479 = vperm.xlu0 %478, %v349
        %v480 = vpop.permute.xlu0 %479
        %483 = vset.pattern.permute.xlu0 0
        %484 = vperm.xlu0 %483, %v350
        %v485 = vpop.permute.xlu0 %484
        %488 = vset.pattern.permute.xlu0 0
        %489 = vperm.xlu0 %488, %v351
        %v490 = vpop.permute.xlu0 %489
        %493 = vset.pattern.permute.xlu0 0
        %494 = vperm.xlu0 %493, %v352
        %v495 = vpop.permute.xlu0 %494
        %498 = vset.pattern.permute.xlu0 0
        %499 = vperm.xlu0 %498, %v353
        %v500 = vpop.permute.xlu0 %499
        %503 = vset.pattern.permute.xlu0 0
        %504 = vperm.xlu0 %503, %v354
        %v505 = vpop.permute.xlu0 %504
        %508 = vset.pattern.permute.xlu0 0
        %509 = vperm.xlu0 %508, %v355
        %v510 = vpop.permute.xlu0 %509
        %513 = vset.pattern.permute.xlu0 0
        %514 = vperm.xlu0 %513, %v356
        %v515 = vpop.permute.xlu0 %514
        %518 = vset.pattern.permute.xlu0 0
        %519 = vperm.xlu0 %518, %v357
        %v520 = vpop.permute.xlu0 %519
        %523 = vset.pattern.permute.xlu0 0
        %524 = vperm.xlu0 %523, %v358
        %v525 = vpop.permute.xlu0 %524
        %528 = vset.pattern.permute.xlu0 0
        %529 = vperm.xlu0 %528, %v359
        %v530 = vpop.permute.xlu0 %529
        %533 = vset.pattern.permute.xlu0 0
        %534 = vperm.xlu0 %533, %v360
        %v535 = vpop.permute.xlu0 %534
        %538 = vset.pattern.permute.xlu0 0
        %539 = vperm.xlu0 %538, %v361
        %v540 = vpop.permute.xlu0 %539
        %v542 = vadd.f32 %v465, %v446
        %v543 = vadd.f32 %v470, %v447
        %v544 = vadd.f32 %v475, %v448
        %v545 = vadd.f32 %v480, %v449
        %v546 = vadd.f32 %v485, %v450
        %v547 = vadd.f32 %v490, %v451
        %v548 = vadd.f32 %v495, %v452
        %v549 = vadd.f32 %v500, %v453
        %v550 = vadd.f32 %v505, %v454
        %v551 = vadd.f32 %v510, %v455
        %v552 = vadd.f32 %v515, %v456
        %v553 = vadd.f32 %v520, %v457
        %v554 = vadd.f32 %v525, %v458
        %v555 = vadd.f32 %v530, %v459
        %v556 = vadd.f32 %v535, %v460
        %v557 = vadd.f32 %v540, %v461
        %558 = vset.pattern.permute.xlu0 1
        %559 = vperm.xlu0 %558, %v330
        %v560 = vpop.permute.xlu0 %559
        %562 = vset.pattern.permute.xlu0 1
        %563 = vperm.xlu0 %562, %v331
        %v564 = vpop.permute.xlu0 %563
        %566 = vset.pattern.permute.xlu0 1
        %567 = vperm.xlu0 %566, %v332
        %v568 = vpop.permute.xlu0 %567
        %570 = vset.pattern.permute.xlu0 1
        %571 = vperm.xlu0 %570, %v333
        %v572 = vpop.permute.xlu0 %571
        %574 = vset.pattern.permute.xlu0 1
        %575 = vperm.xlu0 %574, %v334
        %v576 = vpop.permute.xlu0 %575
        %578 = vset.pattern.permute.xlu0 1
        %579 = vperm.xlu0 %578, %v335
        %v580 = vpop.permute.xlu0 %579
        %582 = vset.pattern.permute.xlu0 1
        %583 = vperm.xlu0 %582, %v336
        %v584 = vpop.permute.xlu0 %583
        %586 = vset.pattern.permute.xlu0 1
        %587 = vperm.xlu0 %586, %v337
        %v588 = vpop.permute.xlu0 %587
        %590 = vset.pattern.permute.xlu0 1
        %591 = vperm.xlu0 %590, %v338
        %v592 = vpop.permute.xlu0 %591
        %594 = vset.pattern.permute.xlu0 1
        %595 = vperm.xlu0 %594, %v339
        %v596 = vpop.permute.xlu0 %595
        %598 = vset.pattern.permute.xlu0 1
        %599 = vperm.xlu0 %598, %v340
        %v600 = vpop.permute.xlu0 %599
        %602 = vset.pattern.permute.xlu0 1
        %603 = vperm.xlu0 %602, %v341
        %v604 = vpop.permute.xlu0 %603
        %606 = vset.pattern.permute.xlu0 1
        %607 = vperm.xlu0 %606, %v342
        %v608 = vpop.permute.xlu0 %607
        %610 = vset.pattern.permute.xlu0 1
        %611 = vperm.xlu0 %610, %v343
        %v612 = vpop.permute.xlu0 %611
        %614 = vset.pattern.permute.xlu0 1
        %615 = vperm.xlu0 %614, %v344
        %v616 = vpop.permute.xlu0 %615
        %618 = vset.pattern.permute.xlu0 1
        %619 = vperm.xlu0 %618, %v345
        %v620 = vpop.permute.xlu0 %619
        %v622 = vlaneseq
        %v623 = vshrl.u32 %v622, 7
        %v624 = vsub.s32 1, %v623
        %v625 = vrot.slane %v329, %v624
        %v626 = vmul.f32 %v560, %v625
        %v627 = vmul.f32 %v564, %v625
        %v628 = vmul.f32 %v568, %v625
        %v629 = vmul.f32 %v572, %v625
        %v630 = vmul.f32 %v576, %v625
        %v631 = vmul.f32 %v580, %v625
        %v632 = vmul.f32 %v584, %v625
        %v633 = vmul.f32 %v588, %v625
        %v634 = vmul.f32 %v592, %v625
        %v635 = vmul.f32 %v596, %v625
        %v636 = vmul.f32 %v600, %v625
        %v637 = vmul.f32 %v604, %v625
        %v638 = vmul.f32 %v608, %v625
        %v639 = vmul.f32 %v612, %v625
        %v640 = vmul.f32 %v616, %v625
        %v641 = vmul.f32 %v620, %v625
        %v642 = vadd.f32 %v542, %v626
        %v643 = vadd.f32 %v543, %v627
        %v644 = vadd.f32 %v544, %v628
        %v645 = vadd.f32 %v545, %v629
        %v646 = vadd.f32 %v546, %v630
        %v647 = vadd.f32 %v547, %v631
        %v648 = vadd.f32 %v548, %v632
        %v649 = vadd.f32 %v549, %v633
        %v650 = vadd.f32 %v550, %v634
        %v651 = vadd.f32 %v551, %v635
        %v652 = vadd.f32 %v552, %v636
        %v653 = vadd.f32 %v553, %v637
        %v654 = vadd.f32 %v554, %v638
        %v655 = vadd.f32 %v555, %v639
        %v656 = vadd.f32 %v556, %v640
        %v657 = vadd.f32 %v557, %v641
        %658 = vset.pattern.permute.xlu0 2
        %659 = vperm.xlu0 %658, %v330
        %v660 = vpop.permute.xlu0 %659
        %662 = vset.pattern.permute.xlu0 2
        %663 = vperm.xlu0 %662, %v331
        %v664 = vpop.permute.xlu0 %663
        %666 = vset.pattern.permute.xlu0 2
        %667 = vperm.xlu0 %666, %v332
        %v668 = vpop.permute.xlu0 %667
        %670 = vset.pattern.permute.xlu0 2
        %671 = vperm.xlu0 %670, %v333
        %v672 = vpop.permute.xlu0 %671
        %674 = vset.pattern.permute.xlu0 2
        %675 = vperm.xlu0 %674, %v334
        %v676 = vpop.permute.xlu0 %675
        %678 = vset.pattern.permute.xlu0 2
        %679 = vperm.xlu0 %678, %v335
        %v680 = vpop.permute.xlu0 %679
        %682 = vset.pattern.permute.xlu0 2
        %683 = vperm.xlu0 %682, %v336
        %v684 = vpop.permute.xlu0 %683
        %686 = vset.pattern.permute.xlu0 2
        %687 = vperm.xlu0 %686, %v337
        %v688 = vpop.permute.xlu0 %687
        %690 = vset.pattern.permute.xlu0 2
        %691 = vperm.xlu0 %690, %v338
        %v692 = vpop.permute.xlu0 %691
        %694 = vset.pattern.permute.xlu0 2
        %695 = vperm.xlu0 %694, %v339
        %v696 = vpop.permute.xlu0 %695
        %698 = vset.pattern.permute.xlu0 2
        %699 = vperm.xlu0 %698, %v340
        %v700 = vpop.permute.xlu0 %699
        %702 = vset.pattern.permute.xlu0 2
        %703 = vperm.xlu0 %702, %v341
        %v704 = vpop.permute.xlu0 %703
        %706 = vset.pattern.permute.xlu0 2
        %707 = vperm.xlu0 %706, %v342
        %v708 = vpop.permute.xlu0 %707
        %710 = vset.pattern.permute.xlu0 2
        %711 = vperm.xlu0 %710, %v343
        %v712 = vpop.permute.xlu0 %711
        %714 = vset.pattern.permute.xlu0 2
        %715 = vperm.xlu0 %714, %v344
        %v716 = vpop.permute.xlu0 %715
        %718 = vset.pattern.permute.xlu0 2
        %719 = vperm.xlu0 %718, %v345
        %v720 = vpop.permute.xlu0 %719
        %v722 = vlaneseq
        %v723 = vshrl.u32 %v722, 7
        %v724 = vsub.s32 2, %v723
        %v725 = vrot.slane %v329, %v724
        %v726 = vmul.f32 %v660, %v725
        %v727 = vmul.f32 %v664, %v725
        %v728 = vmul.f32 %v668, %v725
        %v729 = vmul.f32 %v672, %v725
        %v730 = vmul.f32 %v676, %v725
        %v731 = vmul.f32 %v680, %v725
        %v732 = vmul.f32 %v684, %v725
        %v733 = vmul.f32 %v688, %v725
        %v734 = vmul.f32 %v692, %v725
        %v735 = vmul.f32 %v696, %v725
        %v736 = vmul.f32 %v700, %v725
        %v737 = vmul.f32 %v704, %v725
        %v738 = vmul.f32 %v708, %v725
        %v739 = vmul.f32 %v712, %v725
        %v740 = vmul.f32 %v716, %v725
        %v741 = vmul.f32 %v720, %v725
        %v742 = vadd.f32 %v642, %v726
        %v743 = vadd.f32 %v643, %v727
        %v744 = vadd.f32 %v644, %v728
        %v745 = vadd.f32 %v645, %v729
        %v746 = vadd.f32 %v646, %v730
        %v747 = vadd.f32 %v647, %v731
        %v748 = vadd.f32 %v648, %v732
        %v749 = vadd.f32 %v649, %v733
        %v750 = vadd.f32 %v650, %v734
        %v751 = vadd.f32 %v651, %v735
        %v752 = vadd.f32 %v652, %v736
        %v753 = vadd.f32 %v653, %v737
        %v754 = vadd.f32 %v654, %v738
        %v755 = vadd.f32 %v655, %v739
        %v756 = vadd.f32 %v656, %v740
        %v757 = vadd.f32 %v657, %v741
        %758 = vset.pattern.permute.xlu0 3
        %759 = vperm.xlu0 %758, %v330
        %v760 = vpop.permute.xlu0 %759
        %762 = vset.pattern.permute.xlu0 3
        %763 = vperm.xlu0 %762, %v331
        %v764 = vpop.permute.xlu0 %763
        %766 = vset.pattern.permute.xlu0 3
        %767 = vperm.xlu0 %766, %v332
        %v768 = vpop.permute.xlu0 %767
        %770 = vset.pattern.permute.xlu0 3
        %771 = vperm.xlu0 %770, %v333
        %v772 = vpop.permute.xlu0 %771
        %774 = vset.pattern.permute.xlu0 3
        %775 = vperm.xlu0 %774, %v334
        %v776 = vpop.permute.xlu0 %775
        %778 = vset.pattern.permute.xlu0 3
        %779 = vperm.xlu0 %778, %v335
        %v780 = vpop.permute.xlu0 %779
        %782 = vset.pattern.permute.xlu0 3
        %783 = vperm.xlu0 %782, %v336
        %v784 = vpop.permute.xlu0 %783
        %786 = vset.pattern.permute.xlu0 3
        %787 = vperm.xlu0 %786, %v337
        %v788 = vpop.permute.xlu0 %787
        %790 = vset.pattern.permute.xlu0 3
        %791 = vperm.xlu0 %790, %v338
        %v792 = vpop.permute.xlu0 %791
        %794 = vset.pattern.permute.xlu0 3
        %795 = vperm.xlu0 %794, %v339
        %v796 = vpop.permute.xlu0 %795
        %798 = vset.pattern.permute.xlu0 3
        %799 = vperm.xlu0 %798, %v340
        %v800 = vpop.permute.xlu0 %799
        %802 = vset.pattern.permute.xlu0 3
        %803 = vperm.xlu0 %802, %v341
        %v804 = vpop.permute.xlu0 %803
        %806 = vset.pattern.permute.xlu0 3
        %807 = vperm.xlu0 %806, %v342
        %v808 = vpop.permute.xlu0 %807
        %810 = vset.pattern.permute.xlu0 3
        %811 = vperm.xlu0 %810, %v343
        %v812 = vpop.permute.xlu0 %811
        %814 = vset.pattern.permute.xlu0 3
        %815 = vperm.xlu0 %814, %v344
        %v816 = vpop.permute.xlu0 %815
        %818 = vset.pattern.permute.xlu0 3
        %819 = vperm.xlu0 %818, %v345
        %v820 = vpop.permute.xlu0 %819
        %v822 = vlaneseq
        %v823 = vshrl.u32 %v822, 7
        %v824 = vsub.s32 3, %v823
        %v825 = vrot.slane %v329, %v824
        %v826 = vmul.f32 %v760, %v825
        %v827 = vmul.f32 %v764, %v825
        %v828 = vmul.f32 %v768, %v825
        %v829 = vmul.f32 %v772, %v825
        %v830 = vmul.f32 %v776, %v825
        %v831 = vmul.f32 %v780, %v825
        %v832 = vmul.f32 %v784, %v825
        %v833 = vmul.f32 %v788, %v825
        %v834 = vmul.f32 %v792, %v825
        %v835 = vmul.f32 %v796, %v825
        %v836 = vmul.f32 %v800, %v825
        %v837 = vmul.f32 %v804, %v825
        %v838 = vmul.f32 %v808, %v825
        %v839 = vmul.f32 %v812, %v825
        %v840 = vmul.f32 %v816, %v825
        %v841 = vmul.f32 %v820, %v825
        %v842 = vadd.f32 %v742, %v826
        %v843 = vadd.f32 %v743, %v827
        %v844 = vadd.f32 %v744, %v828
        %v845 = vadd.f32 %v745, %v829
        %v846 = vadd.f32 %v746, %v830
        %v847 = vadd.f32 %v747, %v831
        %v848 = vadd.f32 %v748, %v832
        %v849 = vadd.f32 %v749, %v833
        %v850 = vadd.f32 %v750, %v834
        %v851 = vadd.f32 %v751, %v835
        %v852 = vadd.f32 %v752, %v836
        %v853 = vadd.f32 %v753, %v837
        %v854 = vadd.f32 %v754, %v838
        %v855 = vadd.f32 %v755, %v839
        %v856 = vadd.f32 %v756, %v840
        %v857 = vadd.f32 %v757, %v841
        %v858 = vtanh.pop %v842
        %v859 = vtanh.pop %v843
        %v860 = vtanh.pop %v844
        %v861 = vtanh.pop %v845
        %v862 = vtanh.pop %v846
        %v863 = vtanh.pop %v847
        %v864 = vtanh.pop %v848
        %v865 = vtanh.pop %v849
        %v866 = vtanh.pop %v850
        %v867 = vtanh.pop %v851
        %v868 = vtanh.pop %v852
        %v869 = vtanh.pop %v853
        %v870 = vtanh.pop %v854
        %v871 = vtanh.pop %v855
        %v872 = vtanh.pop %v856
        %v873 = vtanh.pop %v857
        %v874 = vld [vmem:[%s3] sm:$0xff]
        %v875 = vld [vmem:[%s3 + $0x8] sm:$0xff]
        %v876 = vld [vmem:[%s3 + $0x10] sm:$0xff]
        %v877 = vld [vmem:[%s3 + $0x18] sm:$0xff]
        %v878 = vld [vmem:[%s3 + $0x20] sm:$0xff]
        %v879 = vld [vmem:[%s3 + $0x28] sm:$0xff]
        %v880 = vld [vmem:[%s3 + $0x30] sm:$0xff]
        %v881 = vld [vmem:[%s3 + $0x38] sm:$0xff]
        %v882 = vld [vmem:[%s3 + $0x40] sm:$0xff]
        %v883 = vld [vmem:[%s3 + $0x48] sm:$0xff]
        %v884 = vld [vmem:[%s3 + $0x50] sm:$0xff]
        %v885 = vld [vmem:[%s3 + $0x58] sm:$0xff]
        %v886 = vld [vmem:[%s3 + $0x60] sm:$0xff]
        %v887 = vld [vmem:[%s3 + $0x68] sm:$0xff]
        %v888 = vld [vmem:[%s3 + $0x70] sm:$0xff]
        %v889 = vld [vmem:[%s3 + $0x78] sm:$0xff]
        %v890 = vld [vmem:[%s4] sm:$0xff]
        %v891 = vld [vmem:[%s4 + $0x8] sm:$0xff]
        %v892 = vld [vmem:[%s4 + $0x10] sm:$0xff]
        %v893 = vld [vmem:[%s4 + $0x18] sm:$0xff]
        %v894 = vld [vmem:[%s4 + $0x20] sm:$0xff]
        %v895 = vld [vmem:[%s4 + $0x28] sm:$0xff]
        %v896 = vld [vmem:[%s4 + $0x30] sm:$0xff]
        %v897 = vld [vmem:[%s4 + $0x38] sm:$0xff]
        %v898 = vld [vmem:[%s4 + $0x40] sm:$0xff]
        %v899 = vld [vmem:[%s4 + $0x48] sm:$0xff]
        %v900 = vld [vmem:[%s4 + $0x50] sm:$0xff]
        %v901 = vld [vmem:[%s4 + $0x58] sm:$0xff]
        %v902 = vld [vmem:[%s4 + $0x60] sm:$0xff]
        %v903 = vld [vmem:[%s4 + $0x68] sm:$0xff]
        %v904 = vld [vmem:[%s4 + $0x70] sm:$0xff]
        %v905 = vld [vmem:[%s4 + $0x78] sm:$0xff]
        %907 = vset.pattern.permute.xlu0 0
        %908 = vperm.xlu0 %907, %v890
        %v909 = vpop.permute.xlu0 %908
        %912 = vset.pattern.permute.xlu0 0
        %913 = vperm.xlu0 %912, %v891
        %v914 = vpop.permute.xlu0 %913
        %917 = vset.pattern.permute.xlu0 0
        %918 = vperm.xlu0 %917, %v892
        %v919 = vpop.permute.xlu0 %918
        %922 = vset.pattern.permute.xlu0 0
        %923 = vperm.xlu0 %922, %v893
        %v924 = vpop.permute.xlu0 %923
        %927 = vset.pattern.permute.xlu0 0
        %928 = vperm.xlu0 %927, %v894
        %v929 = vpop.permute.xlu0 %928
        %932 = vset.pattern.permute.xlu0 0
        %933 = vperm.xlu0 %932, %v895
        %v934 = vpop.permute.xlu0 %933
        %937 = vset.pattern.permute.xlu0 0
        %938 = vperm.xlu0 %937, %v896
        %v939 = vpop.permute.xlu0 %938
        %942 = vset.pattern.permute.xlu0 0
        %943 = vperm.xlu0 %942, %v897
        %v944 = vpop.permute.xlu0 %943
        %947 = vset.pattern.permute.xlu0 0
        %948 = vperm.xlu0 %947, %v898
        %v949 = vpop.permute.xlu0 %948
        %952 = vset.pattern.permute.xlu0 0
        %953 = vperm.xlu0 %952, %v899
        %v954 = vpop.permute.xlu0 %953
        %957 = vset.pattern.permute.xlu0 0
        %958 = vperm.xlu0 %957, %v900
        %v959 = vpop.permute.xlu0 %958
        %962 = vset.pattern.permute.xlu0 0
        %963 = vperm.xlu0 %962, %v901
        %v964 = vpop.permute.xlu0 %963
        %967 = vset.pattern.permute.xlu0 0
        %968 = vperm.xlu0 %967, %v902
        %v969 = vpop.permute.xlu0 %968
        %972 = vset.pattern.permute.xlu0 0
        %973 = vperm.xlu0 %972, %v903
        %v974 = vpop.permute.xlu0 %973
        %977 = vset.pattern.permute.xlu0 0
        %978 = vperm.xlu0 %977, %v904
        %v979 = vpop.permute.xlu0 %978
        %982 = vset.pattern.permute.xlu0 0
        %983 = vperm.xlu0 %982, %v905
        %v984 = vpop.permute.xlu0 %983
        %986 = vmatprep.subr.mxu0 0.0
        %987 = vmatpush1.msra.mxu0 %v858
        %988 = vmatprep.subr.mxu0 0.0
        %989 = vmatpush1.msra.mxu0 %v859
        %990 = vmatprep.subr.mxu0 0.0
        %991 = vmatpush1.msra.mxu0 %v860
        %992 = vmatprep.subr.mxu0 0.0
        %993 = vmatpush1.msra.mxu0 %v861
        %994 = vmatprep.subr.mxu0 0.0
        %995 = vmatpush1.msra.mxu0 %v862
        %996 = vmatprep.subr.mxu0 0.0
        %997 = vmatpush1.msra.mxu0 %v863
        %998 = vmatprep.subr.mxu0 0.0
        %999 = vmatpush1.msra.mxu0 %v864
        %1000 = vmatprep.subr.mxu0 0.0
        %1001 = vmatpush1.msra.mxu0 %v865
        %1002 = vmatprep.subr.mxu0 0.0
        %1003 = vmatpush1.msra.mxu0 %v866
        %1004 = vmatprep.subr.mxu0 0.0
        %1005 = vmatpush1.msra.mxu0 %v867
        %1006 = vmatprep.subr.mxu0 0.0
        %1007 = vmatpush1.msra.mxu0 %v868
        %1008 = vmatprep.subr.mxu0 0.0
        %1009 = vmatpush1.msra.mxu0 %v869
        %1010 = vmatprep.subr.mxu0 0.0
        %1011 = vmatpush1.msra.mxu0 %v870
        %1012 = vmatprep.subr.mxu0 0.0
        %1013 = vmatpush1.msra.mxu0 %v871
        %1014 = vmatprep.subr.mxu0 0.0
        %1015 = vmatpush1.msra.mxu0 %v872
        %1016 = vmatprep.subr.mxu0 0.0
        %1017 = vmatpush1.msra.mxu0 %v873
        %1018 = vmatprep.subr.mxu0 0.0
        %1019 = vmatpush1.msra.mxu0 0.0
        %1020 = vmatprep.subr.mxu0 0.0
        %1021 = vmatpush1.msra.mxu0 0.0
        %1022 = vmatprep.subr.mxu0 0.0
        %1023 = vmatpush1.msra.mxu0 0.0
        %1024 = vmatprep.subr.mxu0 0.0
        %1025 = vmatpush1.msra.mxu0 0.0
        %1026 = vmatprep.subr.mxu0 0.0
        %1027 = vmatpush1.msra.mxu0 0.0
        %1028 = vmatprep.subr.mxu0 0.0
        %1029 = vmatpush1.msra.mxu0 0.0
        %1030 = vmatprep.subr.mxu0 0.0
        %1031 = vmatpush1.msra.mxu0 0.0
        %1032 = vmatprep.subr.mxu0 0.0
        %1033 = vmatpush1.msra.mxu0 0.0
        %1034 = vmatprep.subr.mxu0 0.0
        %1035 = vmatpush1.msra.mxu0 0.0
        %1036 = vmatprep.subr.mxu0 0.0
        %1037 = vmatpush1.msra.mxu0 0.0
        %1038 = vmatprep.subr.mxu0 0.0
        %1039 = vmatpush1.msra.mxu0 0.0
        %1040 = vmatprep.subr.mxu0 0.0
        %1041 = vmatpush1.msra.mxu0 0.0
        %1042 = vmatprep.subr.mxu0 0.0
        %1043 = vmatpush1.msra.mxu0 0.0
        %1044 = vmatprep.subr.mxu0 0.0
        %1045 = vmatpush1.msra.mxu0 0.0
        %1046 = vmatprep.subr.mxu0 0.0
        %1047 = vmatpush1.msra.mxu0 0.0
        %1048 = vmatprep.subr.mxu0 0.0
        %1049 = vmatpush1.msra.mxu0 0.0
        %1050 = vmatprep.mubr.f32.mxu0 0.0
        %1051 = vmatmul.mubr.f32.gmra.mrb[0].mxu0 %v874
        %v1052 = vpop.f32.mrb[0].mxu0
        %v1053 = vadd.f32 %v909, %v1052
        %v1054 = vpop.f32.mrb[0].mxu0
        %1055 = vmatprep.mubr.f32.mxu0 0.0
        %1056 = vmatmul.mubr.f32.gmra.mrb[0].mxu0 %v875
        %v1057 = vpop.f32.mrb[0].mxu0
        %v1058 = vadd.f32 %v914, %v1057
        %v1059 = vpop.f32.mrb[0].mxu0
        %1060 = vmatprep.mubr.f32.mxu0 0.0
        %1061 = vmatmul.mubr.f32.gmra.mrb[0].mxu0 %v876
        %v1062 = vpop.f32.mrb[0].mxu0
        %v1063 = vadd.f32 %v919, %v1062
        %v1064 = vpop.f32.mrb[0].mxu0
        %1065 = vmatprep.mubr.f32.mxu0 0.0
        %1066 = vmatmul.mubr.f32.gmra.mrb[0].mxu0 %v877
        %v1067 = vpop.f32.mrb[0].mxu0
        %v1068 = vadd.f32 %v924, %v1067
        %v1069 = vpop.f32.mrb[0].mxu0
        %1070 = vmatprep.mubr.f32.mxu0 0.0
        %1071 = vmatmul.mubr.f32.gmra.mrb[0].mxu0 %v878
        %v1072 = vpop.f32.mrb[0].mxu0
        %v1073 = vadd.f32 %v929, %v1072
        %v1074 = vpop.f32.mrb[0].mxu0
        %1075 = vmatprep.mubr.f32.mxu0 0.0
        %1076 = vmatmul.mubr.f32.gmra.mrb[0].mxu0 %v879
        %v1077 = vpop.f32.mrb[0].mxu0
        %v1078 = vadd.f32 %v934, %v1077
        %v1079 = vpop.f32.mrb[0].mxu0
        %1080 = vmatprep.mubr.f32.mxu0 0.0
        %1081 = vmatmul.mubr.f32.gmra.mrb[0].mxu0 %v880
        %v1082 = vpop.f32.mrb[0].mxu0
        %v1083 = vadd.f32 %v939, %v1082
        %v1084 = vpop.f32.mrb[0].mxu0
        %1085 = vmatprep.mubr.f32.mxu0 0.0
        %1086 = vmatmul.mubr.f32.gmra.mrb[0].mxu0 %v881
        %v1087 = vpop.f32.mrb[0].mxu0
        %v1088 = vadd.f32 %v944, %v1087
        %v1089 = vpop.f32.mrb[0].mxu0
        %1090 = vmatprep.mubr.f32.mxu0 0.0
        %1091 = vmatmul.mubr.f32.gmra.mrb[0].mxu0 %v882
        %v1092 = vpop.f32.mrb[0].mxu0
        %v1093 = vadd.f32 %v949, %v1092
        %v1094 = vpop.f32.mrb[0].mxu0
        %1095 = vmatprep.mubr.f32.mxu0 0.0
        %1096 = vmatmul.mubr.f32.gmra.mrb[0].mxu0 %v883
        %v1097 = vpop.f32.mrb[0].mxu0
        %v1098 = vadd.f32 %v954, %v1097
        %v1099 = vpop.f32.mrb[0].mxu0
        %1100 = vmatprep.mubr.f32.mxu0 0.0
        %1101 = vmatmul.mubr.f32.gmra.mrb[0].mxu0 %v884
        %v1102 = vpop.f32.mrb[0].mxu0
        %v1103 = vadd.f32 %v959, %v1102
        %v1104 = vpop.f32.mrb[0].mxu0
        %1105 = vmatprep.mubr.f32.mxu0 0.0
        %1106 = vmatmul.mubr.f32.gmra.mrb[0].mxu0 %v885
        %v1107 = vpop.f32.mrb[0].mxu0
        %v1108 = vadd.f32 %v964, %v1107
        %v1109 = vpop.f32.mrb[0].mxu0
        %1110 = vmatprep.mubr.f32.mxu0 0.0
        %1111 = vmatmul.mubr.f32.gmra.mrb[0].mxu0 %v886
        %v1112 = vpop.f32.mrb[0].mxu0
        %v1113 = vadd.f32 %v969, %v1112
        %v1114 = vpop.f32.mrb[0].mxu0
        %1115 = vmatprep.mubr.f32.mxu0 0.0
        %1116 = vmatmul.mubr.f32.gmra.mrb[0].mxu0 %v887
        %v1117 = vpop.f32.mrb[0].mxu0
        %v1118 = vadd.f32 %v974, %v1117
        %v1119 = vpop.f32.mrb[0].mxu0
        %1120 = vmatprep.mubr.f32.mxu0 0.0
        %1121 = vmatmul.mubr.f32.gmra.mrb[0].mxu0 %v888
        %v1122 = vpop.f32.mrb[0].mxu0
        %v1123 = vadd.f32 %v979, %v1122
        %v1124 = vpop.f32.mrb[0].mxu0
        %1125 = vmatprep.mubr.f32.mxu0 0.0
        %1126 = vmatmul.mubr.f32.gmra.mrb[0].mxu0 %v889
        %v1127 = vpop.f32.mrb[0].mxu0
        %v1128 = vadd.f32 %v984, %v1127
        %v1129 = vpop.f32.mrb[0].mxu0
        %1130 = vdwg.mxu0
        %v1131 = vtanh.pop %v1053
        %v1132 = vtanh.pop %v1058
        %v1133 = vtanh.pop %v1063
        %v1134 = vtanh.pop %v1068
        %v1135 = vtanh.pop %v1073
        %v1136 = vtanh.pop %v1078
        %v1137 = vtanh.pop %v1083
        %v1138 = vtanh.pop %v1088
        %v1139 = vtanh.pop %v1093
        %v1140 = vtanh.pop %v1098
        %v1141 = vtanh.pop %v1103
        %v1142 = vtanh.pop %v1108
        %v1143 = vtanh.pop %v1113
        %v1144 = vtanh.pop %v1118
        %v1145 = vtanh.pop %v1123
        %v1146 = vtanh.pop %v1128
        %v1147 = vld [vmem:[%s5] sm:$0xff]
        %v1148 = vld [vmem:[%s5 + $0x8] sm:$0xff]
        %v1149 = vld [vmem:[%s5 + $0x10] sm:$0xff]
        %v1150 = vld [vmem:[%s5 + $0x18] sm:$0xff]
        %v1151 = vld [vmem:[%s5 + $0x20] sm:$0xff]
        %v1152 = vld [vmem:[%s5 + $0x28] sm:$0xff]
        %v1153 = vld [vmem:[%s5 + $0x30] sm:$0xff]
        %v1154 = vld [vmem:[%s5 + $0x38] sm:$0xff]
        %v1155 = vld [vmem:[%s5 + $0x40] sm:$0xff]
        %v1156 = vld [vmem:[%s5 + $0x48] sm:$0xff]
        %v1157 = vld [vmem:[%s5 + $0x50] sm:$0xff]
        %v1158 = vld [vmem:[%s5 + $0x58] sm:$0xff]
        %v1159 = vld [vmem:[%s5 + $0x60] sm:$0xff]
        %v1160 = vld [vmem:[%s5 + $0x68] sm:$0xff]
        %v1161 = vld [vmem:[%s5 + $0x70] sm:$0xff]
        %v1162 = vld [vmem:[%s5 + $0x78] sm:$0xff]
        %v1163 = vld [vmem:[%s6] sm:$0xff]
        %v1164 = vld [vmem:[%s6 + $0x8] sm:$0xff]
        %v1165 = vld [vmem:[%s6 + $0x10] sm:$0xff]
        %v1166 = vld [vmem:[%s6 + $0x18] sm:$0xff]
        %v1167 = vld [vmem:[%s6 + $0x20] sm:$0xff]
        %v1168 = vld [vmem:[%s6 + $0x28] sm:$0xff]
        %v1169 = vld [vmem:[%s6 + $0x30] sm:$0xff]
        %v1170 = vld [vmem:[%s6 + $0x38] sm:$0xff]
        %v1171 = vld [vmem:[%s6 + $0x40] sm:$0xff]
        %v1172 = vld [vmem:[%s6 + $0x48] sm:$0xff]
        %v1173 = vld [vmem:[%s6 + $0x50] sm:$0xff]
        %v1174 = vld [vmem:[%s6 + $0x58] sm:$0xff]
        %v1175 = vld [vmem:[%s6 + $0x60] sm:$0xff]
        %v1176 = vld [vmem:[%s6 + $0x68] sm:$0xff]
        %v1177 = vld [vmem:[%s6 + $0x70] sm:$0xff]
        %v1178 = vld [vmem:[%s6 + $0x78] sm:$0xff]
        %1180 = vset.pattern.permute.xlu0 0
        %1181 = vperm.xlu0 %1180, %v1163
        %v1182 = vpop.permute.xlu0 %1181
        %1185 = vset.pattern.permute.xlu0 0
        %1186 = vperm.xlu0 %1185, %v1164
        %v1187 = vpop.permute.xlu0 %1186
        %1190 = vset.pattern.permute.xlu0 0
        %1191 = vperm.xlu0 %1190, %v1165
        %v1192 = vpop.permute.xlu0 %1191
        %1195 = vset.pattern.permute.xlu0 0
        %1196 = vperm.xlu0 %1195, %v1166
        %v1197 = vpop.permute.xlu0 %1196
        %1200 = vset.pattern.permute.xlu0 0
        %1201 = vperm.xlu0 %1200, %v1167
        %v1202 = vpop.permute.xlu0 %1201
        %1205 = vset.pattern.permute.xlu0 0
        %1206 = vperm.xlu0 %1205, %v1168
        %v1207 = vpop.permute.xlu0 %1206
        %1210 = vset.pattern.permute.xlu0 0
        %1211 = vperm.xlu0 %1210, %v1169
        %v1212 = vpop.permute.xlu0 %1211
        %1215 = vset.pattern.permute.xlu0 0
        %1216 = vperm.xlu0 %1215, %v1170
        %v1217 = vpop.permute.xlu0 %1216
        %1220 = vset.pattern.permute.xlu0 0
        %1221 = vperm.xlu0 %1220, %v1171
        %v1222 = vpop.permute.xlu0 %1221
        %1225 = vset.pattern.permute.xlu0 0
        %1226 = vperm.xlu0 %1225, %v1172
        %v1227 = vpop.permute.xlu0 %1226
        %1230 = vset.pattern.permute.xlu0 0
        %1231 = vperm.xlu0 %1230, %v1173
        %v1232 = vpop.permute.xlu0 %1231
        %1235 = vset.pattern.permute.xlu0 0
        %1236 = vperm.xlu0 %1235, %v1174
        %v1237 = vpop.permute.xlu0 %1236
        %1240 = vset.pattern.permute.xlu0 0
        %1241 = vperm.xlu0 %1240, %v1175
        %v1242 = vpop.permute.xlu0 %1241
        %1245 = vset.pattern.permute.xlu0 0
        %1246 = vperm.xlu0 %1245, %v1176
        %v1247 = vpop.permute.xlu0 %1246
        %1250 = vset.pattern.permute.xlu0 0
        %1251 = vperm.xlu0 %1250, %v1177
        %v1252 = vpop.permute.xlu0 %1251
        %1255 = vset.pattern.permute.xlu0 0
        %1256 = vperm.xlu0 %1255, %v1178
        %v1257 = vpop.permute.xlu0 %1256
        %1259 = vmatprep.subr.mxu0 0.0
        %1260 = vmatpush1.msra.mxu0 %v1131
        %1261 = vmatprep.subr.mxu0 0.0
        %1262 = vmatpush1.msra.mxu0 %v1132
        %1263 = vmatprep.subr.mxu0 0.0
        %1264 = vmatpush1.msra.mxu0 %v1133
        %1265 = vmatprep.subr.mxu0 0.0
        %1266 = vmatpush1.msra.mxu0 %v1134
        %1267 = vmatprep.subr.mxu0 0.0
        %1268 = vmatpush1.msra.mxu0 %v1135
        %1269 = vmatprep.subr.mxu0 0.0
        %1270 = vmatpush1.msra.mxu0 %v1136
        %1271 = vmatprep.subr.mxu0 0.0
        %1272 = vmatpush1.msra.mxu0 %v1137
        %1273 = vmatprep.subr.mxu0 0.0
        %1274 = vmatpush1.msra.mxu0 %v1138
        %1275 = vmatprep.subr.mxu0 0.0
        %1276 = vmatpush1.msra.mxu0 %v1139
        %1277 = vmatprep.subr.mxu0 0.0
        %1278 = vmatpush1.msra.mxu0 %v1140
        %1279 = vmatprep.subr.mxu0 0.0
        %1280 = vmatpush1.msra.mxu0 %v1141
        %1281 = vmatprep.subr.mxu0 0.0
        %1282 = vmatpush1.msra.mxu0 %v1142
        %1283 = vmatprep.subr.mxu0 0.0
        %1284 = vmatpush1.msra.mxu0 %v1143
        %1285 = vmatprep.subr.mxu0 0.0
        %1286 = vmatpush1.msra.mxu0 %v1144
        %1287 = vmatprep.subr.mxu0 0.0
        %1288 = vmatpush1.msra.mxu0 %v1145
        %1289 = vmatprep.subr.mxu0 0.0
        %1290 = vmatpush1.msra.mxu0 %v1146
        %1291 = vmatprep.subr.mxu0 0.0
        %1292 = vmatpush1.msra.mxu0 0.0
        %1293 = vmatprep.subr.mxu0 0.0
        %1294 = vmatpush1.msra.mxu0 0.0
        %1295 = vmatprep.subr.mxu0 0.0
        %1296 = vmatpush1.msra.mxu0 0.0
        %1297 = vmatprep.subr.mxu0 0.0
        %1298 = vmatpush1.msra.mxu0 0.0
        %1299 = vmatprep.subr.mxu0 0.0
        %1300 = vmatpush1.msra.mxu0 0.0
        %1301 = vmatprep.subr.mxu0 0.0
        %1302 = vmatpush1.msra.mxu0 0.0
        %1303 = vmatprep.subr.mxu0 0.0
        %1304 = vmatpush1.msra.mxu0 0.0
        %1305 = vmatprep.subr.mxu0 0.0
        %1306 = vmatpush1.msra.mxu0 0.0
        %1307 = vmatprep.subr.mxu0 0.0
        %1308 = vmatpush1.msra.mxu0 0.0
        %1309 = vmatprep.subr.mxu0 0.0
        %1310 = vmatpush1.msra.mxu0 0.0
        %1311 = vmatprep.subr.mxu0 0.0
        %1312 = vmatpush1.msra.mxu0 0.0
        %1313 = vmatprep.subr.mxu0 0.0
        %1314 = vmatpush1.msra.mxu0 0.0
        %1315 = vmatprep.subr.mxu0 0.0
        %1316 = vmatpush1.msra.mxu0 0.0
        %1317 = vmatprep.subr.mxu0 0.0
        %1318 = vmatpush1.msra.mxu0 0.0
        %1319 = vmatprep.subr.mxu0 0.0
        %1320 = vmatpush1.msra.mxu0 0.0
        %1321 = vmatprep.subr.mxu0 0.0
        %1322 = vmatpush1.msra.mxu0 0.0
        %1323 = vmatprep.mubr.f32.mxu0 0.0
        %1324 = vmatmul.mubr.f32.gmra.mrb[0].mxu0 %v1147
        %v1325 = vpop.f32.mrb[0].mxu0
        %v1326 = vadd.f32 %v1182, %v1325
        %v1327 = vpop.f32.mrb[0].mxu0
        %1328 = vmatprep.mubr.f32.mxu0 0.0
        %1329 = vmatmul.mubr.f32.gmra.mrb[0].mxu0 %v1148
        %v1330 = vpop.f32.mrb[0].mxu0
        %v1331 = vadd.f32 %v1187, %v1330
        %v1332 = vpop.f32.mrb[0].mxu0
        %1333 = vmatprep.mubr.f32.mxu0 0.0
        %1334 = vmatmul.mubr.f32.gmra.mrb[0].mxu0 %v1149
        %v1335 = vpop.f32.mrb[0].mxu0
        %v1336 = vadd.f32 %v1192, %v1335
        %v1337 = vpop.f32.mrb[0].mxu0
        %1338 = vmatprep.mubr.f32.mxu0 0.0
        %1339 = vmatmul.mubr.f32.gmra.mrb[0].mxu0 %v1150
        %v1340 = vpop.f32.mrb[0].mxu0
        %v1341 = vadd.f32 %v1197, %v1340
        %v1342 = vpop.f32.mrb[0].mxu0
        %1343 = vmatprep.mubr.f32.mxu0 0.0
        %1344 = vmatmul.mubr.f32.gmra.mrb[0].mxu0 %v1151
        %v1345 = vpop.f32.mrb[0].mxu0
        %v1346 = vadd.f32 %v1202, %v1345
        %v1347 = vpop.f32.mrb[0].mxu0
        %1348 = vmatprep.mubr.f32.mxu0 0.0
        %1349 = vmatmul.mubr.f32.gmra.mrb[0].mxu0 %v1152
        %v1350 = vpop.f32.mrb[0].mxu0
        %v1351 = vadd.f32 %v1207, %v1350
        %v1352 = vpop.f32.mrb[0].mxu0
        %1353 = vmatprep.mubr.f32.mxu0 0.0
        %1354 = vmatmul.mubr.f32.gmra.mrb[0].mxu0 %v1153
        %v1355 = vpop.f32.mrb[0].mxu0
        %v1356 = vadd.f32 %v1212, %v1355
        %v1357 = vpop.f32.mrb[0].mxu0
        %1358 = vmatprep.mubr.f32.mxu0 0.0
        %1359 = vmatmul.mubr.f32.gmra.mrb[0].mxu0 %v1154
        %v1360 = vpop.f32.mrb[0].mxu0
        %v1361 = vadd.f32 %v1217, %v1360
        %v1362 = vpop.f32.mrb[0].mxu0
        %1363 = vmatprep.mubr.f32.mxu0 0.0
        %1364 = vmatmul.mubr.f32.gmra.mrb[0].mxu0 %v1155
        %v1365 = vpop.f32.mrb[0].mxu0
        %v1366 = vadd.f32 %v1222, %v1365
        %v1367 = vpop.f32.mrb[0].mxu0
        %1368 = vmatprep.mubr.f32.mxu0 0.0
        %1369 = vmatmul.mubr.f32.gmra.mrb[0].mxu0 %v1156
        %v1370 = vpop.f32.mrb[0].mxu0
        %v1371 = vadd.f32 %v1227, %v1370
        %v1372 = vpop.f32.mrb[0].mxu0
        %1373 = vmatprep.mubr.f32.mxu0 0.0
        %1374 = vmatmul.mubr.f32.gmra.mrb[0].mxu0 %v1157
        %v1375 = vpop.f32.mrb[0].mxu0
        %v1376 = vadd.f32 %v1232, %v1375
        %v1377 = vpop.f32.mrb[0].mxu0
        %1378 = vmatprep.mubr.f32.mxu0 0.0
        %1379 = vmatmul.mubr.f32.gmra.mrb[0].mxu0 %v1158
        %v1380 = vpop.f32.mrb[0].mxu0
        %v1381 = vadd.f32 %v1237, %v1380
        %v1382 = vpop.f32.mrb[0].mxu0
        %1383 = vmatprep.mubr.f32.mxu0 0.0
        %1384 = vmatmul.mubr.f32.gmra.mrb[0].mxu0 %v1159
        %v1385 = vpop.f32.mrb[0].mxu0
        %v1386 = vadd.f32 %v1242, %v1385
        %v1387 = vpop.f32.mrb[0].mxu0
        %1388 = vmatprep.mubr.f32.mxu0 0.0
        %1389 = vmatmul.mubr.f32.gmra.mrb[0].mxu0 %v1160
        %v1390 = vpop.f32.mrb[0].mxu0
        %v1391 = vadd.f32 %v1247, %v1390
        %v1392 = vpop.f32.mrb[0].mxu0
        %1393 = vmatprep.mubr.f32.mxu0 0.0
        %1394 = vmatmul.mubr.f32.gmra.mrb[0].mxu0 %v1161
        %v1395 = vpop.f32.mrb[0].mxu0
        %v1396 = vadd.f32 %v1252, %v1395
        %v1397 = vpop.f32.mrb[0].mxu0
        %1398 = vmatprep.mubr.f32.mxu0 0.0
        %1399 = vmatmul.mubr.f32.gmra.mrb[0].mxu0 %v1162
        %v1400 = vpop.f32.mrb[0].mxu0
        %v1401 = vadd.f32 %v1257, %v1400
        %v1402 = vpop.f32.mrb[0].mxu0
        %1403 = vdwg.mxu0
        %v1404 = vtanh.pop %v1326
        %v1405 = vtanh.pop %v1331
        %v1406 = vtanh.pop %v1336
        %v1407 = vtanh.pop %v1341
        %v1408 = vtanh.pop %v1346
        %v1409 = vtanh.pop %v1351
        %v1410 = vtanh.pop %v1356
        %v1411 = vtanh.pop %v1361
        %v1412 = vtanh.pop %v1366
        %v1413 = vtanh.pop %v1371
        %v1414 = vtanh.pop %v1376
        %v1415 = vtanh.pop %v1381
        %v1416 = vtanh.pop %v1386
        %v1417 = vtanh.pop %v1391
        %v1418 = vtanh.pop %v1396
        %v1419 = vtanh.pop %v1401
        %v1420 = vld [vmem:[%s7] sm:$0x1]
        %v1421 = vld [vmem:[#allocation2] sm:$0x1]
        %1423 = vset.pattern.permute.xlu0 0
        %1424 = vperm.xlu0 %1423, %v1421
        %v1425 = vpop.permute.xlu0 %1424
        %v1427 = vlaneseq
        %v1428 = vshrl.u32 %v1427, 7
        %v1429 = vsub.s32 0, %v1428
        %v1430 = vrot.slane %v1425, %v1429
        %1431 = vmatprep.subr.mxu0 0.0
        %1432 = vmatpush1.msra.mxu0 %v1404
        %1433 = vmatprep.subr.mxu0 0.0
        %1434 = vmatpush1.msra.mxu0 %v1405
        %1435 = vmatprep.subr.mxu0 0.0
        %1436 = vmatpush1.msra.mxu0 %v1406
        %1437 = vmatprep.subr.mxu0 0.0
        %1438 = vmatpush1.msra.mxu0 %v1407
        %1439 = vmatprep.subr.mxu0 0.0
        %1440 = vmatpush1.msra.mxu0 %v1408
        %1441 = vmatprep.subr.mxu0 0.0
        %1442 = vmatpush1.msra.mxu0 %v1409
        %1443 = vmatprep.subr.mxu0 0.0
        %1444 = vmatpush1.msra.mxu0 %v1410
        %1445 = vmatprep.subr.mxu0 0.0
        %1446 = vmatpush1.msra.mxu0 %v1411
        %1447 = vmatprep.subr.mxu0 0.0
        %1448 = vmatpush1.msra.mxu0 %v1412
        %1449 = vmatprep.subr.mxu0 0.0
        %1450 = vmatpush1.msra.mxu0 %v1413
        %1451 = vmatprep.subr.mxu0 0.0
        %1452 = vmatpush1.msra.mxu0 %v1414
        %1453 = vmatprep.subr.mxu0 0.0
        %1454 = vmatpush1.msra.mxu0 %v1415
        %1455 = vmatprep.subr.mxu0 0.0
        %1456 = vmatpush1.msra.mxu0 %v1416
        %1457 = vmatprep.subr.mxu0 0.0
        %1458 = vmatpush1.msra.mxu0 %v1417
        %1459 = vmatprep.subr.mxu0 0.0
        %1460 = vmatpush1.msra.mxu0 %v1418
        %1461 = vmatprep.subr.mxu0 0.0
        %1462 = vmatpush1.msra.mxu0 %v1419
        %1463 = vmatprep.subr.mxu0 0.0
        %1464 = vmatpush1.msra.mxu0 0.0
        %1465 = vmatprep.subr.mxu0 0.0
        %1466 = vmatpush1.msra.mxu0 0.0
        %1467 = vmatprep.subr.mxu0 0.0
        %1468 = vmatpush1.msra.mxu0 0.0
        %1469 = vmatprep.subr.mxu0 0.0
        %1470 = vmatpush1.msra.mxu0 0.0
        %1471 = vmatprep.subr.mxu0 0.0
        %1472 = vmatpush1.msra.mxu0 0.0
        %1473 = vmatprep.subr.mxu0 0.0
        %1474 = vmatpush1.msra.mxu0 0.0
        %1475 = vmatprep.subr.mxu0 0.0
        %1476 = vmatpush1.msra.mxu0 0.0
        %1477 = vmatprep.subr.mxu0 0.0
        %1478 = vmatpush1.msra.mxu0 0.0
        %1479 = vmatprep.subr.mxu0 0.0
        %1480 = vmatpush1.msra.mxu0 0.0
        %1481 = vmatprep.subr.mxu0 0.0
        %1482 = vmatpush1.msra.mxu0 0.0
        %1483 = vmatprep.subr.mxu0 0.0
        %1484 = vmatpush1.msra.mxu0 0.0
        %1485 = vmatprep.subr.mxu0 0.0
        %1486 = vmatpush1.msra.mxu0 0.0
        %1487 = vmatprep.subr.mxu0 0.0
        %1488 = vmatpush1.msra.mxu0 0.0
        %1489 = vmatprep.subr.mxu0 0.0
        %1490 = vmatpush1.msra.mxu0 0.0
        %1491 = vmatprep.subr.mxu0 0.0
        %1492 = vmatpush1.msra.mxu0 0.0
        %1493 = vmatprep.subr.mxu0 0.0
        %1494 = vmatpush1.msra.mxu0 0.0
        %1495 = vmatprep.mubr.f32.mxu0 0.0
        %1496 = vmatmul.mubr.f32.gmra.mrb[0].mxu0 %v1420
        %v1497 = vpop.f32.mrb[0].mxu0
        %v1498 = vadd.f32 %v1430, %v1497
        %v1499 = vpop.f32.mrb[0].mxu0
        %1500 = vdwg.mxu0
        %1501 = vst [vmem:[%s324] sm:$0x1] %v1498
        %s1502 = sand.u32 %s227, 1
        %s1503 = scalar_lea.sflag [#allocation4], %s1502
        %s1504 = sand.u32 %s227, 1
        %s1505 = scalar_lea.vmem [#allocation3], %s1504
        // Predicated region
        $region57: #{tpu_custom_call.1} parent=55 // pred_check
          %p1506 = pneg %p237
        $region58: #{tpu_custom_call.1} parent=55 // pred_check_branch
          %1508 = sbr.rel (%p1506) target = $region60
        $region59: #{tpu_custom_call.1} parent=55 // pred_region
          %s1510 = ssub.s32 16, 16
          %1511 = vsyncadd %s1503, %s1510
          %s1512 = smul.addr %s25, 16
          %s1513 = scalar_lea.hbm %s9, %s1512
          %s1515 = sshll.u32 %s1505, 4
          %s1516 = int_to_ptr.vmem [resolvable:$true] %s1515
          %1518 = dma.vmem_to_hbm [thread:$0]  %s1516, 16, %s1513, %s1503
        $region60: #{tpu_custom_call.1} parent=55 // pred_fallthru
          _
      $region56: #{tpu_custom_call.1} parent=5 // pred_fallthru
        _
      %p1519 = scmp.le.s32.totalorder 2, %s20
      // Predicated region
      $region61: #{tpu_custom_call.1} parent=5 // pred_check
        %p1520 = pneg %p1519
      $region62: #{tpu_custom_call.1} parent=5 // pred_check_branch
        %1522 = sbr.rel (%p1520) target = $region64
      $region63: #{tpu_custom_call.1} parent=5 // pred_region
        %s1523 = ssub.s32 %s20, 2
        // Predicated region
        $region65: #{tpu_custom_call.1} parent=63 // pred_check
          %p1524 = pneg %p243
        $region66: #{tpu_custom_call.1} parent=63 // pred_check_branch
          %1526 = sbr.rel (%p1524) target = $region68
        $region67: #{tpu_custom_call.1} parent=63 // pred_region
          %s1527 = sand.u32 %s228, 1
          %s1528 = scalar_lea.sflag [#allocation4], %s1527
          %s1529 = sand.u32 %s228, 1
          %s1530 = scalar_lea.vmem [#allocation3], %s1529
          %1531 = dma.done %s1528, 16
        $region68: #{tpu_custom_call.1} parent=63 // pred_fallthru
          _
      $region64: #{tpu_custom_call.1} parent=5 // pred_fallthru
        _
    $region6: #{tpu_custom_call.1} parent=1 // loop_footer
      %s24 = sadd.s32 1, %s20
    $region7: #{tpu_custom_call.1} parent=1 // loop_footer_branch
      %19 = sbr.rel target = $region3
    $region8: #{tpu_custom_call.1} parent=1 // loop_exit
      _
    %1532 = vsyncpa [#allocation4], 1
    %s1533 = scalar_lea.sflag [#allocation4], 1
    %1534 = vsyncpa %s1533, 1

</llo_original>
